<compile_context>
chip_gen: v7x
topology: tpu7x:2x2x1
jax: 0.10.0
libtpu: 0.0.40
codegen_flags: <defaults>
</compile_context>

<pallas_src>
import functools

import jax
import jax.numpy as jnp
from jax import lax
from jax.experimental import pallas as pl
from jax.experimental.pallas import tpu as pltpu


def _round_up(x, m):
    return ((x + m - 1) // m) * m


def _mha_pool_kernel(q_ref, k_ref, mask_ref,
                     wq_ref, bq_ref, wk_ref, wv_ref, bv_ref,
                     out_ref, attn_ref,
                     *, n_head, d_k, d_v, use_bf16_matmul):
    """One grid step == TB graphs.

    q_ref    : (TB, Dq)          query rows
    k_ref    : (TB, L, Dk)       padded node features (keys == values)
    mask_ref : (TB, L)  float32  1.0 = padded node (masked out)
    wq_ref   : (n_head*d_k, Dq)  PyTorch (out, in) layout
    wk_ref   : (n_head*d_k, Dk)
    wv_ref   : (n_head*d_v, Dk)
    bq_ref   : (1, n_head*d_k)   f32
    bv_ref   : (1, n_head*d_v)   f32
    out_ref  : (TB, n_head*d_v)
    attn_ref : (TB, L)           head-averaged attention weights
    """
    f32 = jnp.float32
    mm_dtype = jnp.bfloat16 if use_bf16_matmul else f32

    def mm(a, b, dims):
        return lax.dot_general(a, b, dimension_numbers=(dims, ((), ())),
                               preferred_element_type=f32)

    q_in = q_ref[...]                       # (TB, Dq), f32 or bf16 (wrapper cast)
    k_f32 = k_ref[...].astype(f32)          # (TB, L, Dk) f32 for VPU/EUP math
    masked = mask_ref[...] > 0.5            # (TB, L) bool
    inv_temp = 1.0 / (float(d_k) ** 0.5)

    out_heads = []
    attn_sum = None
    for h in range(n_head):                 # static unroll; every matmul has M=TB
        wq_h = wq_ref[h * d_k:(h + 1) * d_k, :]        # (d_k, Dq)  static ref view
        wk_h = wk_ref[h * d_k:(h + 1) * d_k, :]        # (d_k, Dk)
        wv_h = wv_ref[h * d_v:(h + 1) * d_v, :]        # (d_v, Dk)
        bq_h = bq_ref[:, h * d_k:(h + 1) * d_k]        # (1, d_k)  f32
        bv_h = bv_ref[:, h * d_v:(h + 1) * d_v]        # (1, d_v)  f32

        # qp_h = (q @ Wq_h^T + bq_h) * 1/sqrt(d_k)          -> (TB, d_k)
        qp_h = mm(q_in, wq_h, ((1,), (1,))) + bq_h
        qp_h = qp_h * inv_temp
        # Fold W_ks into the query (b_ks cancels in softmax): r_h -> (TB, Dk)
        r_h = mm(qp_h.astype(mm_dtype), wk_h, ((1,), (0,)))

        # scores + masked softmax over the L nodes             -> (TB, L)
        s_h = jnp.sum(k_f32 * r_h[:, None, :], axis=-1)
        s_h = jnp.where(masked, -1e30, s_h)     # finite sentinel: empty graphs stay NaN-free
        m_h = jnp.max(s_h, axis=-1, keepdims=True)
        e_h = jnp.exp(s_h - m_h)
        denom = jnp.sum(e_h, axis=-1, keepdims=True)
        # approx=True is a free EUP win, but exact keeps the f32 reference check tight.
        p_h = e_h * pl.reciprocal(denom, approx=False)

        # context c_h = sum_l p * k ; b_vs folds to one add (sum_l p = 1)
        c_h = jnp.sum(p_h[:, :, None] * k_f32, axis=1)              # (TB, Dk)
        o_h = mm(c_h.astype(mm_dtype), wv_h, ((1,), (1,))) + bv_h   # (TB, d_v)

        out_heads.append(o_h)
        attn_sum = p_h if attn_sum is None else attn_sum + p_h

    # Single lane-major store of the whole pooled block.
    out_ref[...] = jnp.concatenate(out_heads, axis=-1).astype(out_ref.dtype)
    attn_ref[...] = (attn_sum * (1.0 / n_head)).astype(attn_ref.dtype)


def multihead_att_pool(q, k, w_qs, b_qs, w_ks, b_ks, w_vs, b_vs, mask=None, *,
                       n_head, batch_tile=32, use_bf16_matmul=False):
    """q: (B, Dq); k: (B, L, Dk) padded node features (keys == values);
    weights in PyTorch (out, in) layout; mask: optional (B, L), 1.0 = padded.

    batch_tile: graphs per grid step.  Size it so the double-buffered
    (TB, L, Dk) k-block fits scoped VMEM (v7x: keep it <= ~32 for large L*Dk;
    v6e/v5e can go 2x larger).  use_bf16_matmul=True is recommended on v6e/v7x
    (halves the HBM k-stream; f32 accumulation is kept).

    Returns (output (B, n_head*d_v), attn (B, L))."""
    _ = b_ks  # cancels inside the per-graph softmax (constant per head)

    B, Dq = q.shape
    _, L, Dk = k.shape
    O_k = w_qs.shape[0]
    O_v = w_vs.shape[0]
    d_k = O_k // n_head
    d_v = O_v // n_head
    out_dtype = q.dtype

    if mask is None:
        mask = jnp.zeros((B, L), jnp.float32)
    mask = mask.astype(jnp.float32)

    # ---- wrapper-side alignment padding ---------------------------------
    # L -> multiple of 8 (sublane grain of the (L, Dk) tiles); padded nodes
    # are masked out.  Batch -> multiple of the batch tile.
    Lp = _round_up(L, 8)
    if Lp != L:
        k = jnp.pad(k, ((0, 0), (0, Lp - L), (0, 0)))
        mask = jnp.pad(mask, ((0, 0), (0, Lp - L)), constant_values=1.0)

    tb = min(_round_up(max(int(batch_tile), 1), 8), _round_up(B, 8))
    Bp = _round_up(B, tb)
    if Bp != B:
        q = jnp.pad(q, ((0, Bp - B), (0, 0)))
        k = jnp.pad(k, ((0, Bp - B), (0, 0), (0, 0)))
        mask = jnp.pad(mask, ((0, Bp - B), (0, 0)), constant_values=1.0)

    # Biases stay f32 (tiny elementwise adds); matmul operands optionally bf16,
    # cast ONCE here so the HBM DMA itself is half-width.
    bq2 = b_qs.reshape(1, O_k).astype(jnp.float32)
    bv2 = b_vs.reshape(1, O_v).astype(jnp.float32)
    if use_bf16_matmul:
        q = q.astype(jnp.bfloat16)
        k = k.astype(jnp.bfloat16)
        w_qs = w_qs.astype(jnp.bfloat16)
        w_ks = w_ks.astype(jnp.bfloat16)
        w_vs = w_vs.astype(jnp.bfloat16)

    act_bytes = 2 if use_bf16_matmul else 4
    out_bytes = jnp.dtype(out_dtype).itemsize
    block_bytes = ((tb * Dq + tb * Lp * Dk) * act_bytes
                   + tb * Lp * 4                 # mask block
                   + tb * O_v * out_bytes        # pooled output block
                   + tb * Lp * 4)                # attn output block
    weight_bytes = (O_k * Dq + O_k * Dk + O_v * Dk) * act_bytes + (O_k + O_v) * 4
    vmem_limit = int(min(max(3 * block_bytes + 2 * weight_bytes + (4 << 20),
                             32 << 20), 100 << 20))

    kernel = functools.partial(_mha_pool_kernel, n_head=n_head, d_k=d_k,
                               d_v=d_v, use_bf16_matmul=use_bf16_matmul)

    out, attn = pl.pallas_call(
        kernel,
        out_shape=(jax.ShapeDtypeStruct((Bp, O_v), out_dtype),
                   jax.ShapeDtypeStruct((Bp, Lp), jnp.float32)),
        grid=(Bp // tb,),
        in_specs=[
            pl.BlockSpec((tb, Dq), lambda i: (i, 0)),         # q tile
            pl.BlockSpec((tb, Lp, Dk), lambda i: (i, 0, 0)),  # node features tile
            pl.BlockSpec((tb, Lp), lambda i: (i, 0)),         # padding mask tile
            pl.BlockSpec((O_k, Dq), lambda i: (0, 0)),        # w_qs (VMEM-resident)
            pl.BlockSpec((1, O_k), lambda i: (0, 0)),         # b_qs
            pl.BlockSpec((O_k, Dk), lambda i: (0, 0)),        # w_ks
            pl.BlockSpec((O_v, Dk), lambda i: (0, 0)),        # w_vs
            pl.BlockSpec((1, O_v), lambda i: (0, 0)),         # b_vs
        ],
        out_specs=(
            pl.BlockSpec((tb, O_v), lambda i: (i, 0)),
            pl.BlockSpec((tb, Lp), lambda i: (i, 0)),
        ),
        compiler_params=pltpu.CompilerParams(
            # NOTE(v7x): if a profile shows one TensorCore idle, switch this
            # axis to pltpu.CORE_PARALLEL to shard batch tiles across both TCs.
            dimension_semantics=("parallel",),
            vmem_limit_bytes=vmem_limit),
    )(q, k, mask, w_qs, bq2, w_ks, w_vs, bv2)

    return out[:B], attn[:B, :L]


def _reference(q, k_list, w_qs, b_qs, w_ks, b_ks, w_vs, b_vs, n_head):
    """Pure-JAX mirror of the PyTorch per-graph loop (eval mode)."""
    hp = jax.lax.Precision.HIGHEST
    d_k = w_ks.shape[0] // n_head
    d_v = w_vs.shape[0] // n_head
    outs, attns = [], []
    for i in range(len(k_list)):
        kk = k_list[i]                                            # (n_i, Dk)
        qp = (jnp.dot(q[i:i + 1], w_qs.T, precision=hp) + b_qs).reshape(n_head, d_k)
        kp = (jnp.dot(kk, w_ks.T, precision=hp) + b_ks).reshape(-1, n_head, d_k)
        vp = (jnp.dot(kk, w_vs.T, precision=hp) + b_vs).reshape(-1, n_head, d_v)
        kp = kp.transpose(1, 0, 2)                                # (n_head, n_i, d_k)
        vp = vp.transpose(1, 0, 2)                                # (n_head, n_i, d_v)
        s = (qp[:, None, :] * kp).sum(-1) / (d_k ** 0.5)          # (n_head, n_i)
        p = jax.nn.softmax(s, axis=1)
        o = (p[:, :, None] * vp).sum(1).reshape(n_head * d_v)
        outs.append(o)
        attns.append(p.mean(0))
    return jnp.stack(outs, axis=0), attns


if __name__ == "__main__":
    # Small shapes consistent with the module: batch B=20, padded node count
    # L=13, d_q_original=32, d_k_original=32, n_head=2 -> d_k = d_v = 16.
    # batch_tile=8 -> 3 grid steps, and exercises both B and L padding.
    B, L, D_q, D_k, n_head = 20, 13, 32, 32, 2
    d_head = D_k // n_head

    key = jax.random.PRNGKey(0)
    ks = jax.random.split(key, 8)

    q = jax.random.normal(ks[0], (B, D_q), dtype=jnp.float32)
    k_pad = jax.random.normal(ks[1], (B, L, D_k), dtype=jnp.float32)
    # Deterministic mix of full-length and short graphs.
    lengths = [L if i % 4 == 0 else (i * 5) % (L - 1) + 1 for i in range(B)]

    std_q = (2.0 / (D_q + d_head)) ** 0.5
    std_k = (2.0 / (D_k + d_head)) ** 0.5
    w_qs = jax.random.normal(ks[2], (n_head * d_head, D_q), jnp.float32) * std_q
    b_qs = jax.random.normal(ks[3], (n_head * d_head,), jnp.float32) * 0.02
    w_ks = jax.random.normal(ks[4], (n_head * d_head, D_k), jnp.float32) * std_k
    b_ks = jax.random.normal(ks[5], (n_head * d_head,), jnp.float32) * 0.02
    w_vs = jax.random.normal(ks[6], (n_head * d_head, D_k), jnp.float32) * std_k
    b_vs = jax.random.normal(ks[7], (n_head * d_head,), jnp.float32) * 0.02

    # Padding mask: 1.0 where the node index is beyond the graph's real length.
    mask = (jnp.arange(L)[None, :] >= jnp.array(lengths)[:, None]).astype(jnp.float32)

    out, attn = multihead_att_pool(q, k_pad, w_qs, b_qs, w_ks, b_ks, w_vs, b_vs,
                                   mask=mask, n_head=n_head, batch_tile=8)
    out = jax.block_until_ready(out)
    attn = jax.block_until_ready(attn)

    # Reference on the (unpadded) variable-length list, like the PyTorch module.
    k_list = [k_pad[i, :lengths[i]] for i in range(B)]
    ref_out, ref_attn_list = _reference(q, k_list, w_qs, b_qs, w_ks, b_ks,
                                        w_vs, b_vs, n_head)

    assert out.shape == (B, n_head * d_head), out.shape
    assert attn.shape == (B, L), attn.shape
    assert jnp.allclose(out, ref_out, atol=2e-4, rtol=2e-4), "pooled output mismatch"
    for i in range(B):
        assert jnp.allclose(attn[i, :lengths[i]], ref_attn_list[i],
                            atol=2e-4, rtol=2e-4), f"attn mismatch, graph {i}"
        assert bool(jnp.all(attn[i, lengths[i]:] < 1e-6)), "padded attn not masked"

    print("KERNEL_OK")
</pallas_src>

<mosaic_0001>
module attributes {stable_mosaic.version = 11 : i64} {
  func.func @_mha_pool_kernel(%arg0: i32, %arg1: memref<8x32xf32, #tpu.memory_space<vmem>>, %arg2: memref<8x16x32xf32, #tpu.memory_space<vmem>>, %arg3: memref<8x16xf32, #tpu.memory_space<vmem>>, %arg4: memref<32x32xf32, #tpu.memory_space<vmem>>, %arg5: memref<1x32xf32, #tpu.memory_space<vmem>>, %arg6: memref<32x32xf32, #tpu.memory_space<vmem>>, %arg7: memref<32x32xf32, #tpu.memory_space<vmem>>, %arg8: memref<1x32xf32, #tpu.memory_space<vmem>>, %arg9: memref<8x32xf32, #tpu.memory_space<vmem>>, %arg10: memref<8x16xf32, #tpu.memory_space<vmem>>) attributes {dimension_semantics = [#tpu.dimension_semantics<parallel>], iteration_bounds = array<i64: 3>, scalar_prefetch = 0 : i64, scratch_operands = 0 : i64, tpu.core_type = #tpu.core_type<tc>, window_params = [{transform_indices = @transform_0, window_bounds = array<i64: 8, 32>}, {transform_indices = @transform_1, window_bounds = array<i64: 8, 16, 32>}, {transform_indices = @transform_2, window_bounds = array<i64: 8, 16>}, {pipeline_mode = #tpu.pipeline_mode<synchronous>, transform_indices = @transform_3, window_bounds = array<i64: 32, 32>}, {pipeline_mode = #tpu.pipeline_mode<synchronous>, transform_indices = @transform_4, window_bounds = array<i64: 1, 32>}, {pipeline_mode = #tpu.pipeline_mode<synchronous>, transform_indices = @transform_5, window_bounds = array<i64: 32, 32>}, {pipeline_mode = #tpu.pipeline_mode<synchronous>, transform_indices = @transform_6, window_bounds = array<i64: 32, 32>}, {pipeline_mode = #tpu.pipeline_mode<synchronous>, transform_indices = @transform_7, window_bounds = array<i64: 1, 32>}, {transform_indices = @transform_8, window_bounds = array<i64: 8, 32>}, {transform_indices = @transform_9, window_bounds = array<i64: 8, 16>}]} {
    %c0 = arith.constant 0 : index
    %c0_0 = arith.constant 0 : index
    %0 = vector.load %arg1[%c0, %c0_0] : memref<8x32xf32, #tpu.memory_space<vmem>>, vector<8x32xf32>
    %c0_1 = arith.constant 0 : index
    %c0_2 = arith.constant 0 : index
    %c0_3 = arith.constant 0 : index
    %1 = vector.load %arg2[%c0_1, %c0_2, %c0_3] : memref<8x16x32xf32, #tpu.memory_space<vmem>>, vector<8x16x32xf32>
    %c0_4 = arith.constant 0 : index
    %c0_5 = arith.constant 0 : index
    %2 = vector.load %arg3[%c0_4, %c0_5] : memref<8x16xf32, #tpu.memory_space<vmem>>, vector<8x16xf32>
    %cst = arith.constant 5.000000e-01 : f32
    %3 = vector.broadcast %cst : f32 to vector<8x16xf32>
    %4 = arith.cmpf ogt, %2, %3 : vector<8x16xf32>
    %c0_6 = arith.constant 0 : index
    %c0_7 = arith.constant 0 : index
    %5 = vector.load %arg4[%c0_6, %c0_7] : memref<32x32xf32, #tpu.memory_space<vmem>>, vector<16x32xf32>
    %c0_8 = arith.constant 0 : index
    %c0_9 = arith.constant 0 : index
    %6 = vector.load %arg6[%c0_8, %c0_9] : memref<32x32xf32, #tpu.memory_space<vmem>>, vector<16x32xf32>
    %c0_10 = arith.constant 0 : index
    %c0_11 = arith.constant 0 : index
    %7 = vector.load %arg7[%c0_10, %c0_11] : memref<32x32xf32, #tpu.memory_space<vmem>>, vector<16x32xf32>
    %c0_12 = arith.constant 0 : index
    %c0_13 = arith.constant 0 : index
    %8 = vector.load %arg5[%c0_12, %c0_13] : memref<1x32xf32, #tpu.memory_space<vmem>>, vector<1x16xf32>
    %c0_14 = arith.constant 0 : index
    %c0_15 = arith.constant 0 : index
    %9 = vector.load %arg8[%c0_14, %c0_15] : memref<1x32xf32, #tpu.memory_space<vmem>>, vector<1x16xf32>
    %cst_16 = arith.constant dense<0.000000e+00> : vector<8x16xf32>
    %10 = tpu.matmul %0, %5, %cst_16 {dimension_numbers = #tpu.dot_dimension_numbers<[1], [1], [0], [0], [0, 0, 1, 0], [], []>} : vector<8x32xf32>, vector<16x32xf32>, vector<8x16xf32> -> vector<8x16xf32>
    %11 = vector.broadcast %8 : vector<1x16xf32> to vector<8x16xf32>
    %12 = arith.addf %10, %11 : vector<8x16xf32>
    %cst_17 = arith.constant 2.500000e-01 : f32
    %13 = vector.broadcast %cst_17 : f32 to vector<8x16xf32>
    %14 = arith.mulf %12, %13 : vector<8x16xf32>
    %cst_18 = arith.constant dense<0.000000e+00> : vector<8x32xf32>
    %15 = tpu.matmul %14, %6, %cst_18 {dimension_numbers = #tpu.dot_dimension_numbers<[1], [0], [0], [1], [0, 0, 1, 1], [], []>} : vector<8x16xf32>, vector<16x32xf32>, vector<8x32xf32> -> vector<8x32xf32>
    %16 = vector.shape_cast %15 : vector<8x32xf32> to vector<8x1x32xf32>
    %17 = vector.broadcast %16 : vector<8x1x32xf32> to vector<8x16x32xf32>
    %18 = arith.mulf %1, %17 : vector<8x16x32xf32>
    %cst_19 = arith.constant dense<0.000000e+00> : vector<8x16xf32>
    %19 = vector.multi_reduction <add>, %18, %cst_19 [2] : vector<8x16x32xf32> to vector<8x16xf32>
    %cst_20 = arith.constant -1.000000e+30 : f32
    %20 = vector.broadcast %cst_20 : f32 to vector<8x16xf32>
    %21 = arith.select %4, %20, %19 : vector<8x16xi1>, vector<8x16xf32>
    %cst_21 = arith.constant dense<0xFF800000> : vector<8xf32>
    %22 = vector.multi_reduction <maximumf>, %21, %cst_21 [1] : vector<8x16xf32> to vector<8xf32>
    %23 = vector.shape_cast %22 : vector<8xf32> to vector<8x1xf32>
    %24 = vector.broadcast %23 : vector<8x1xf32> to vector<8x16xf32>
    %25 = arith.subf %21, %24 : vector<8x16xf32>
    %26 = math.exp %25 : vector<8x16xf32>
    %cst_22 = arith.constant dense<0.000000e+00> : vector<8xf32>
    %27 = vector.multi_reduction <add>, %26, %cst_22 [1] : vector<8x16xf32> to vector<8xf32>
    %28 = vector.shape_cast %27 : vector<8xf32> to vector<8x1xf32>
    %29 = tpu.reciprocal %28 : vector<8x1xf32> -> vector<8x1xf32>
    %30 = vector.broadcast %29 : vector<8x1xf32> to vector<8x16xf32>
    %31 = arith.mulf %26, %30 : vector<8x16xf32>
    %32 = vector.shape_cast %31 : vector<8x16xf32> to vector<8x16x1xf32>
    %33 = vector.broadcast %32 : vector<8x16x1xf32> to vector<8x16x32xf32>
    %34 = arith.mulf %33, %1 : vector<8x16x32xf32>
    %cst_23 = arith.constant dense<0.000000e+00> : vector<8x32xf32>
    %35 = vector.multi_reduction <add>, %34, %cst_23 [1] : vector<8x16x32xf32> to vector<8x32xf32>
    %cst_24 = arith.constant dense<0.000000e+00> : vector<8x16xf32>
    %36 = tpu.matmul %35, %7, %cst_24 {dimension_numbers = #tpu.dot_dimension_numbers<[1], [1], [0], [0], [0, 0, 1, 0], [], []>} : vector<8x32xf32>, vector<16x32xf32>, vector<8x16xf32> -> vector<8x16xf32>
    %37 = vector.broadcast %9 : vector<1x16xf32> to vector<8x16xf32>
    %38 = arith.addf %36, %37 : vector<8x16xf32>
    %c16 = arith.constant 16 : index
    %c0_25 = arith.constant 0 : index
    %39 = vector.load %arg4[%c16, %c0_25] : memref<32x32xf32, #tpu.memory_space<vmem>>, vector<16x32xf32>
    %c16_26 = arith.constant 16 : index
    %c0_27 = arith.constant 0 : index
    %40 = vector.load %arg6[%c16_26, %c0_27] : memref<32x32xf32, #tpu.memory_space<vmem>>, vector<16x32xf32>
    %c16_28 = arith.constant 16 : index
    %c0_29 = arith.constant 0 : index
    %41 = vector.load %arg7[%c16_28, %c0_29] : memref<32x32xf32, #tpu.memory_space<vmem>>, vector<16x32xf32>
    %c0_30 = arith.constant 0 : index
    %c16_31 = arith.constant 16 : index
    %42 = vector.load %arg5[%c0_30, %c16_31] : memref<1x32xf32, #tpu.memory_space<vmem>>, vector<1x16xf32>
    %c0_32 = arith.constant 0 : index
    %c16_33 = arith.constant 16 : index
    %43 = vector.load %arg8[%c0_32, %c16_33] : memref<1x32xf32, #tpu.memory_space<vmem>>, vector<1x16xf32>
    %cst_34 = arith.constant dense<0.000000e+00> : vector<8x16xf32>
    %44 = tpu.matmul %0, %39, %cst_34 {dimension_numbers = #tpu.dot_dimension_numbers<[1], [1], [0], [0], [0, 0, 1, 0], [], []>} : vector<8x32xf32>, vector<16x32xf32>, vector<8x16xf32> -> vector<8x16xf32>
    %45 = vector.broadcast %42 : vector<1x16xf32> to vector<8x16xf32>
    %46 = arith.addf %44, %45 : vector<8x16xf32>
    %cst_35 = arith.constant 2.500000e-01 : f32
    %47 = vector.broadcast %cst_35 : f32 to vector<8x16xf32>
    %48 = arith.mulf %46, %47 : vector<8x16xf32>
    %cst_36 = arith.constant dense<0.000000e+00> : vector<8x32xf32>
    %49 = tpu.matmul %48, %40, %cst_36 {dimension_numbers = #tpu.dot_dimension_numbers<[1], [0], [0], [1], [0, 0, 1, 1], [], []>} : vector<8x16xf32>, vector<16x32xf32>, vector<8x32xf32> -> vector<8x32xf32>
    %50 = vector.shape_cast %49 : vector<8x32xf32> to vector<8x1x32xf32>
    %51 = vector.broadcast %50 : vector<8x1x32xf32> to vector<8x16x32xf32>
    %52 = arith.mulf %1, %51 : vector<8x16x32xf32>
    %cst_37 = arith.constant dense<0.000000e+00> : vector<8x16xf32>
    %53 = vector.multi_reduction <add>, %52, %cst_37 [2] : vector<8x16x32xf32> to vector<8x16xf32>
    %cst_38 = arith.constant -1.000000e+30 : f32
    %54 = vector.broadcast %cst_38 : f32 to vector<8x16xf32>
    %55 = arith.select %4, %54, %53 : vector<8x16xi1>, vector<8x16xf32>
    %cst_39 = arith.constant dense<0xFF800000> : vector<8xf32>
    %56 = vector.multi_reduction <maximumf>, %55, %cst_39 [1] : vector<8x16xf32> to vector<8xf32>
    %57 = vector.shape_cast %56 : vector<8xf32> to vector<8x1xf32>
    %58 = vector.broadcast %57 : vector<8x1xf32> to vector<8x16xf32>
    %59 = arith.subf %55, %58 : vector<8x16xf32>
    %60 = math.exp %59 : vector<8x16xf32>
    %cst_40 = arith.constant dense<0.000000e+00> : vector<8xf32>
    %61 = vector.multi_reduction <add>, %60, %cst_40 [1] : vector<8x16xf32> to vector<8xf32>
    %62 = vector.shape_cast %61 : vector<8xf32> to vector<8x1xf32>
    %63 = tpu.reciprocal %62 : vector<8x1xf32> -> vector<8x1xf32>
    %64 = vector.broadcast %63 : vector<8x1xf32> to vector<8x16xf32>
    %65 = arith.mulf %60, %64 : vector<8x16xf32>
    %66 = vector.shape_cast %65 : vector<8x16xf32> to vector<8x16x1xf32>
    %67 = vector.broadcast %66 : vector<8x16x1xf32> to vector<8x16x32xf32>
    %68 = arith.mulf %67, %1 : vector<8x16x32xf32>
    %cst_41 = arith.constant dense<0.000000e+00> : vector<8x32xf32>
    %69 = vector.multi_reduction <add>, %68, %cst_41 [1] : vector<8x16x32xf32> to vector<8x32xf32>
    %cst_42 = arith.constant dense<0.000000e+00> : vector<8x16xf32>
    %70 = tpu.matmul %69, %41, %cst_42 {dimension_numbers = #tpu.dot_dimension_numbers<[1], [1], [0], [0], [0, 0, 1, 0], [], []>} : vector<8x32xf32>, vector<16x32xf32>, vector<8x16xf32> -> vector<8x16xf32>
    %71 = vector.broadcast %43 : vector<1x16xf32> to vector<8x16xf32>
    %72 = arith.addf %70, %71 : vector<8x16xf32>
    %73 = arith.addf %31, %65 : vector<8x16xf32>
    %74 = tpu.concatenate %38, %72 in 1 : vector<8x16xf32>, vector<8x16xf32> -> vector<8x32xf32>
    %c0_43 = arith.constant 0 : index
    %c0_44 = arith.constant 0 : index
    %75 = vector.load %arg9[%c0_43, %c0_44] : memref<8x32xf32, #tpu.memory_space<vmem>>, vector<8x32xf32>
    tpu.vector_store %arg9[%c0_43, %c0_44], %74 {strides = array<i32>} : memref<8x32xf32, #tpu.memory_space<vmem>>, vector<8x32xf32>,
    %cst_45 = arith.constant 5.000000e-01 : f32
    %76 = vector.broadcast %cst_45 : f32 to vector<8x16xf32>
    %77 = arith.mulf %73, %76 : vector<8x16xf32>
    %c0_46 = arith.constant 0 : index
    %c0_47 = arith.constant 0 : index
    %78 = vector.load %arg10[%c0_46, %c0_47] : memref<8x16xf32, #tpu.memory_space<vmem>>, vector<8x16xf32>
    tpu.vector_store %arg10[%c0_46, %c0_47], %77 {strides = array<i32>} : memref<8x16xf32, #tpu.memory_space<vmem>>, vector<8x16xf32>,
    return
  }
  func.func @transform_0(%arg0: i32) -> (i32, i32) {
    %c0_i32 = arith.constant 0 : i32
    %c0_i32_0 = arith.constant 0 : i32
    return %arg0, %c0_i32 : i32, i32
  }
  func.func @transform_1(%arg0: i32) -> (i32, i32, i32) {
    %c0_i32 = arith.constant 0 : i32
    %c0_i32_0 = arith.constant 0 : i32
    %c0_i32_1 = arith.constant 0 : i32
    return %arg0, %c0_i32, %c0_i32_0 : i32, i32, i32
  }
  func.func @transform_2(%arg0: i32) -> (i32, i32) {
    %c0_i32 = arith.constant 0 : i32
    %c0_i32_0 = arith.constant 0 : i32
    return %arg0, %c0_i32 : i32, i32
  }
  func.func @transform_3(%arg0: i32) -> (i32, i32) {
    %c0_i32 = arith.constant 0 : i32
    %c0_i32_0 = arith.constant 0 : i32
    %c0_i32_1 = arith.constant 0 : i32
    return %c0_i32, %c0_i32_0 : i32, i32
  }
  func.func @transform_4(%arg0: i32) -> (i32, i32) {
    %c0_i32 = arith.constant 0 : i32
    %c0_i32_0 = arith.constant 0 : i32
    %c0_i32_1 = arith.constant 0 : i32
    return %c0_i32, %c0_i32_0 : i32, i32
  }
  func.func @transform_5(%arg0: i32) -> (i32, i32) {
    %c0_i32 = arith.constant 0 : i32
    %c0_i32_0 = arith.constant 0 : i32
    %c0_i32_1 = arith.constant 0 : i32
    return %c0_i32, %c0_i32_0 : i32, i32
  }
  func.func @transform_6(%arg0: i32) -> (i32, i32) {
    %c0_i32 = arith.constant 0 : i32
    %c0_i32_0 = arith.constant 0 : i32
    %c0_i32_1 = arith.constant 0 : i32
    return %c0_i32, %c0_i32_0 : i32, i32
  }
  func.func @transform_7(%arg0: i32) -> (i32, i32) {
    %c0_i32 = arith.constant 0 : i32
    %c0_i32_0 = arith.constant 0 : i32
    %c0_i32_1 = arith.constant 0 : i32
    return %c0_i32, %c0_i32_0 : i32, i32
  }
  func.func @transform_8(%arg0: i32) -> (i32, i32) {
    %c0_i32 = arith.constant 0 : i32
    %c0_i32_0 = arith.constant 0 : i32
    return %arg0, %c0_i32 : i32, i32
  }
  func.func @transform_9(%arg0: i32) -> (i32, i32) {
    %c0_i32 = arith.constant 0 : i32
    %c0_i32_0 = arith.constant 0 : i32
    return %arg0, %c0_i32 : i32, i32
  }
}

</mosaic_0001>

<llo_original>
// kernel: tpu_custom_call.1
$region0: #{tpu_custom_call.1}
  #allocation0 [shape = 'u32[]', space=smem, size = 0x4, offset = 0x4, fixed_abs, tag = 'smem constant byte address 0x4 - core index']
  #allocation1 [shape = 'u32[144,128]{1,0:T(1,128)}', space=vmem, size = 0x12000, scoped, tag = 'internal scratch']
  %s0 = inlined_call_operand.hbm [shape: f32[24,32], index: 0, kind: input, shape index: {}]
  %s1 = inlined_call_operand.hbm [shape: f32[24,16,32], index: 1, kind: input, shape index: {}]
  %s2 = inlined_call_operand.vmem [shape: f32[24,16], index: 2, kind: input, shape index: {}]
  %s3 = inlined_call_operand.vmem [shape: f32[32,32], index: 3, kind: input, shape index: {}]
  %s4 = inlined_call_operand.vmem [shape: f32[1,32], index: 4, kind: input, shape index: {}]
  %s5 = inlined_call_operand.hbm [shape: f32[32,32], index: 5, kind: input, shape index: {}]
  %s6 = inlined_call_operand.hbm [shape: f32[32,32], index: 6, kind: input, shape index: {}]
  %s7 = inlined_call_operand.vmem [shape: f32[1,32], index: 7, kind: input, shape index: {}]
  %s8 = inlined_call_operand.hbm [shape: f32[24,32], index: 8, kind: output, shape index: {0}]
  %s9 = inlined_call_operand.vmem [shape: f32[24,16], index: 9, kind: output, shape index: {1}]
  %10 = xla_tuple %s8, %s9
  %s11 = sld [smem:[#allocation0]]
  $region89: #{tpu_custom_call.1} parent=0
    _
  %s13 = ssub.s32 1, %s11
  %s14 = scalar_select 0, %s13, %s11
  $region1: #{tpu_custom_call.1} parent=0
    #allocation2 [shape = 'u8[8192]{0}', space=vmem, size = 0x2000, scoped, tag = 'input window, operand 0']
    #allocation3 [shape = 's32[2]{0}', space=sflag, size = 0x8, scoped, tag = 'scoped memory for tpu_custom_call.1']
    #allocation4 [shape = 's32[2]{0}', space=sflag, size = 0x8, scoped, tag = 'scoped memory for tpu_custom_call.1']
    #allocation5 [shape = 'u8[131072]{0}', space=vmem, size = 0x20000, scoped, tag = 'input window, operand 1']
    #allocation6 [shape = 's32[2]{0}', space=sflag, size = 0x8, scoped, tag = 'scoped memory for tpu_custom_call.1']
    #allocation7 [shape = 'u8[16384]{0}', space=vmem, size = 0x4000, scoped, tag = 'input window, operand 5, single buffered']
    #allocation8 [shape = 'u8[16384]{0}', space=vmem, size = 0x4000, scoped, tag = 'input window, operand 6, single buffered']
    #allocation9 [shape = 's32[1]{0}', space=sflag, size = 0x4, scoped, tag = 'scoped memory for tpu_custom_call.1']
    #allocation10 [shape = 'u8[8192]{0}', space=vmem, size = 0x2000, scoped, tag = 'output window, operand 0']
    %15 = vsyncpa [#allocation3], 0
    %s16 = scalar_lea.sflag [#allocation3], 1
    %17 = vsyncpa %s16, 0
    %18 = vsyncpa [#allocation6], 0
    %s19 = scalar_lea.sflag [#allocation6], 1
    %20 = vsyncpa %s19, 0
    %21 = vsyncpa [#allocation9], 0
    %22 = vsyncpa [#allocation4], 0
    %s23 = scalar_lea.sflag [#allocation4], 1
    %24 = vsyncpa %s23, 0
    loop: start=0, step=1, limit=5
    $region2: #{tpu_custom_call.1} parent=1 // loop_pre_header
      _
    $region3: #{tpu_custom_call.1} parent=1 // loop_header
      %s26 = sphi 0, %s30
      %p27 = scmp.ge.s32.totalorder %s26, 5
      %s36 = sphi 0, %s38
      %s39 = sphi 0, %s36
      %s40 = sphi 0, %s39
      %s56 = sphi 0, %s40
      %s62 = sphi 0, %s64
      %s65 = sphi 0, %s62
      %s66 = sphi 0, %s65
      %s82 = sphi 0, %s66
      %s88 = sphi 0, %s90
      %s91 = sphi 0, %s88
      %s92 = sphi 0, %s91
      %s108 = sphi 0, %s92
      %s112 = sphi 0, %s112
      %s114 = sphi 0, %s112
      %s115 = sphi 0, %s114
      %s129 = sphi 0, %s115
      %s133 = sphi 0, %s133
      %s135 = sphi 0, %s133
      %s136 = sphi 0, %s135
      %s150 = sphi 0, %s136
      %s154 = sphi 0, %s154
      %s156 = sphi 0, %s154
      %s157 = sphi 0, %s156
      %s171 = sphi 0, %s157
      %s175 = sphi 0, %s175
      %s177 = sphi 0, %s175
      %s178 = sphi 0, %s177
      %s192 = sphi 0, %s178
      %s196 = sphi 0, %s196
      %s198 = sphi 0, %s196
      %s199 = sphi 0, %s198
      %s213 = sphi 0, %s199
      %s219 = sphi 0, %s221
      %s222 = sphi 0, %s219
      %s223 = sphi 0, %s222
      %s239 = sphi 0, %s223
      %s245 = sphi 0, %s247
      %s248 = sphi 0, %s245
      %s249 = sphi 0, %s248
      %s265 = sphi 0, %s249
    $region4: #{tpu_custom_call.1} parent=1 // loop_header_branch
      %29 = sbr.rel (%p27) target = $region8
    $region5: #{tpu_custom_call.1} parent=1 // loop_body
      %s31 = ssub.s32 %s26, 1
      %s32 = ssub.s32 %s26, 2
      %s33 = sadd.s32 %s26, 1
      %s34 = ssub.s32 %s26, %s33
      %p35 = scmp.eq.s32.totalorder %s34, 0
      %s37 = sadd.s32 %s36, 1
      %s38 = scalar_select %p35, %s36, %s37
      %p41 = pneg %p35
      %p42 = scmp.eq.s32.totalorder %s26, 2
      %p43 = por %p41, %p42
      %p44 = scmp.ne.s32.totalorder %s36, %s39
      %p45 = scmp.eq.s32.totalorder %s26, 0
      %p46 = por %p44, %p45
      %p47 = scmp.ne.s32.totalorder %s36, %s39
      %p48 = scmp.eq.s32.totalorder %s31, 2
      %p49 = por %p47, %p48
      %p50 = scmp.ne.s32.totalorder %s39, %s40
      %p51 = scmp.eq.s32.totalorder %s31, 0
      %p52 = por %p50, %p51
      %p53 = scmp.ne.s32.totalorder %s39, %s40
      %p54 = scmp.eq.s32.totalorder %s32, 2
      %p55 = por %p53, %p54
      %p57 = scmp.ne.s32.totalorder %s40, %s56
      %p58 = scmp.eq.s32.totalorder %s32, 0
      %p59 = por %p57, %p58
      %s60 = ssub.s32 %s26, %s33
      %p61 = scmp.eq.s32.totalorder %s60, 0
      %s63 = sadd.s32 %s62, 1
      %s64 = scalar_select %p61, %s62, %s63
      %p67 = pneg %p61
      %p68 = scmp.eq.s32.totalorder %s26, 2
      %p69 = por %p67, %p68
      %p70 = scmp.ne.s32.totalorder %s62, %s65
      %p71 = scmp.eq.s32.totalorder %s26, 0
      %p72 = por %p70, %p71
      %p73 = scmp.ne.s32.totalorder %s62, %s65
      %p74 = scmp.eq.s32.totalorder %s31, 2
      %p75 = por %p73, %p74
      %p76 = scmp.ne.s32.totalorder %s65, %s66
      %p77 = scmp.eq.s32.totalorder %s31, 0
      %p78 = por %p76, %p77
      %p79 = scmp.ne.s32.totalorder %s65, %s66
      %p80 = scmp.eq.s32.totalorder %s32, 2
      %p81 = por %p79, %p80
      %p83 = scmp.ne.s32.totalorder %s66, %s82
      %p84 = scmp.eq.s32.totalorder %s32, 0
      %p85 = por %p83, %p84
      %s86 = ssub.s32 %s26, %s33
      %p87 = scmp.eq.s32.totalorder %s86, 0
      %s89 = sadd.s32 %s88, 1
      %s90 = scalar_select %p87, %s88, %s89
      %p93 = pneg %p87
      %p94 = scmp.eq.s32.totalorder %s26, 2
      %p95 = por %p93, %p94
      %p96 = scmp.ne.s32.totalorder %s88, %s91
      %p97 = scmp.eq.s32.totalorder %s26, 0
      %p98 = por %p96, %p97
      %p99 = scmp.ne.s32.totalorder %s88, %s91
      %p100 = scmp.eq.s32.totalorder %s31, 2
      %p101 = por %p99, %p100
      %p102 = scmp.ne.s32.totalorder %s91, %s92
      %p103 = scmp.eq.s32.totalorder %s31, 0
      %p104 = por %p102, %p103
      %p105 = scmp.ne.s32.totalorder %s91, %s92
      %p106 = scmp.eq.s32.totalorder %s32, 2
      %p107 = por %p105, %p106
      %p109 = scmp.ne.s32.totalorder %s92, %s108
      %p110 = scmp.eq.s32.totalorder %s32, 0
      %p111 = por %p109, %p110
      %s113 = sadd.s32 %s112, 1
      %p116 = scmp.eq.s32.totalorder %s26, 2
      %p117 = scmp.ne.s32.totalorder %s112, %s114
      %p118 = scmp.eq.s32.totalorder %s26, 0
      %p119 = por %p117, %p118
      %p120 = scmp.ne.s32.totalorder %s112, %s114
      %p121 = scmp.eq.s32.totalorder %s31, 2
      %p122 = por %p120, %p121
      %p123 = scmp.ne.s32.totalorder %s114, %s115
      %p124 = scmp.eq.s32.totalorder %s31, 0
      %p125 = por %p123, %p124
      %p126 = scmp.ne.s32.totalorder %s114, %s115
      %p127 = scmp.eq.s32.totalorder %s32, 2
      %p128 = por %p126, %p127
      %p130 = scmp.ne.s32.totalorder %s115, %s129
      %p131 = scmp.eq.s32.totalorder %s32, 0
      %p132 = por %p130, %p131
      %s134 = sadd.s32 %s133, 1
      %p137 = scmp.eq.s32.totalorder %s26, 2
      %p138 = scmp.ne.s32.totalorder %s133, %s135
      %p139 = scmp.eq.s32.totalorder %s26, 0
      %p140 = por %p138, %p139
      %p141 = scmp.ne.s32.totalorder %s133, %s135
      %p142 = scmp.eq.s32.totalorder %s31, 2
      %p143 = por %p141, %p142
      %p144 = scmp.ne.s32.totalorder %s135, %s136
      %p145 = scmp.eq.s32.totalorder %s31, 0
      %p146 = por %p144, %p145
      %p147 = scmp.ne.s32.totalorder %s135, %s136
      %p148 = scmp.eq.s32.totalorder %s32, 2
      %p149 = por %p147, %p148
      %p151 = scmp.ne.s32.totalorder %s136, %s150
      %p152 = scmp.eq.s32.totalorder %s32, 0
      %p153 = por %p151, %p152
      %s155 = sadd.s32 %s154, 1
      %p158 = scmp.eq.s32.totalorder %s26, 2
      %p159 = scmp.ne.s32.totalorder %s154, %s156
      %p160 = scmp.eq.s32.totalorder %s26, 0
      %p161 = por %p159, %p160
      %p162 = scmp.ne.s32.totalorder %s154, %s156
      %p163 = scmp.eq.s32.totalorder %s31, 2
      %p164 = por %p162, %p163
      %p165 = scmp.ne.s32.totalorder %s156, %s157
      %p166 = scmp.eq.s32.totalorder %s31, 0
      %p167 = por %p165, %p166
      %p168 = scmp.ne.s32.totalorder %s156, %s157
      %p169 = scmp.eq.s32.totalorder %s32, 2
      %p170 = por %p168, %p169
      %p172 = scmp.ne.s32.totalorder %s157, %s171
      %p173 = scmp.eq.s32.totalorder %s32, 0
      %p174 = por %p172, %p173
      %s176 = sadd.s32 %s175, 1
      %p179 = scmp.eq.s32.totalorder %s26, 2
      %p180 = scmp.ne.s32.totalorder %s175, %s177
      %p181 = scmp.eq.s32.totalorder %s26, 0
      %p182 = por %p180, %p181
      %p183 = scmp.ne.s32.totalorder %s175, %s177
      %p184 = scmp.eq.s32.totalorder %s31, 2
      %p185 = por %p183, %p184
      %p186 = scmp.ne.s32.totalorder %s177, %s178
      %p187 = scmp.eq.s32.totalorder %s31, 0
      %p188 = por %p186, %p187
      %p189 = scmp.ne.s32.totalorder %s177, %s178
      %p190 = scmp.eq.s32.totalorder %s32, 2
      %p191 = por %p189, %p190
      %p193 = scmp.ne.s32.totalorder %s178, %s192
      %p194 = scmp.eq.s32.totalorder %s32, 0
      %p195 = por %p193, %p194
      %s197 = sadd.s32 %s196, 1
      %p200 = scmp.eq.s32.totalorder %s26, 2
      %p201 = scmp.ne.s32.totalorder %s196, %s198
      %p202 = scmp.eq.s32.totalorder %s26, 0
      %p203 = por %p201, %p202
      %p204 = scmp.ne.s32.totalorder %s196, %s198
      %p205 = scmp.eq.s32.totalorder %s31, 2
      %p206 = por %p204, %p205
      %p207 = scmp.ne.s32.totalorder %s198, %s199
      %p208 = scmp.eq.s32.totalorder %s31, 0
      %p209 = por %p207, %p208
      %p210 = scmp.ne.s32.totalorder %s198, %s199
      %p211 = scmp.eq.s32.totalorder %s32, 2
      %p212 = por %p210, %p211
      %p214 = scmp.ne.s32.totalorder %s199, %s213
      %p215 = scmp.eq.s32.totalorder %s32, 0
      %p216 = por %p214, %p215
      %s217 = ssub.s32 %s26, %s33
      %p218 = scmp.eq.s32.totalorder %s217, 0
      %s220 = sadd.s32 %s219, 1
      %s221 = scalar_select %p218, %s219, %s220
      %p224 = pneg %p218
      %p225 = scmp.eq.s32.totalorder %s26, 2
      %p226 = por %p224, %p225
      %p227 = scmp.ne.s32.totalorder %s219, %s222
      %p228 = scmp.eq.s32.totalorder %s26, 0
      %p229 = por %p227, %p228
      %p230 = scmp.ne.s32.totalorder %s219, %s222
      %p231 = scmp.eq.s32.totalorder %s31, 2
      %p232 = por %p230, %p231
      %p233 = scmp.ne.s32.totalorder %s222, %s223
      %p234 = scmp.eq.s32.totalorder %s31, 0
      %p235 = por %p233, %p234
      %p236 = scmp.ne.s32.totalorder %s222, %s223
      %p237 = scmp.eq.s32.totalorder %s32, 2
      %p238 = por %p236, %p237
      %p240 = scmp.ne.s32.totalorder %s223, %s239
      %p241 = scmp.eq.s32.totalorder %s32, 0
      %p242 = por %p240, %p241
      %s243 = ssub.s32 %s26, %s33
      %p244 = scmp.eq.s32.totalorder %s243, 0
      %s246 = sadd.s32 %s245, 1
      %s247 = scalar_select %p244, %s245, %s246
      %p250 = pneg %p244
      %p251 = scmp.eq.s32.totalorder %s26, 2
      %p252 = por %p250, %p251
      %p253 = scmp.ne.s32.totalorder %s245, %s248
      %p254 = scmp.eq.s32.totalorder %s26, 0
      %p255 = por %p253, %p254
      %p256 = scmp.ne.s32.totalorder %s245, %s248
      %p257 = scmp.eq.s32.totalorder %s31, 2
      %p258 = por %p256, %p257
      %p259 = scmp.ne.s32.totalorder %s248, %s249
      %p260 = scmp.eq.s32.totalorder %s31, 0
      %p261 = por %p259, %p260
      %p262 = scmp.ne.s32.totalorder %s248, %s249
      %p263 = scmp.eq.s32.totalorder %s32, 2
      %p264 = por %p262, %p263
      %p266 = scmp.ne.s32.totalorder %s249, %s265
      %p267 = scmp.eq.s32.totalorder %s32, 0
      %p268 = por %p266, %p267
      %p269 = scmp.le.s32.totalorder 1, %s26
      %p270 = scmp.lt.s32.totalorder %s26, 4
      %p271 = pnand %p269, %p270
      %p272 = pneg %p271
      // Predicated region
      $region9: #{tpu_custom_call.1} parent=5 // pred_check
        _
      $region10: #{tpu_custom_call.1} parent=5 // pred_check_branch
        %274 = sbr.rel (%p271) target = $region12
      $region11: #{tpu_custom_call.1} parent=5 // pred_region
        %s275 = ssub.s32 %s26, 1
        // Predicated region
        $region13: #{tpu_custom_call.1} parent=11 // pred_check
          %p276 = pneg %p125
        $region14: #{tpu_custom_call.1} parent=11 // pred_check_branch
          %278 = sbr.rel (%p276) target = $region16
        $region15: #{tpu_custom_call.1} parent=11 // pred_region
          _
        $region16: #{tpu_custom_call.1} parent=11 // pred_fallthru
          _
        // Predicated region
        $region17: #{tpu_custom_call.1} parent=11 // pred_check
          %p279 = pneg %p146
        $region18: #{tpu_custom_call.1} parent=11 // pred_check_branch
          %281 = sbr.rel (%p279) target = $region20
        $region19: #{tpu_custom_call.1} parent=11 // pred_region
          _
        $region20: #{tpu_custom_call.1} parent=11 // pred_fallthru
          _
        // Predicated region
        $region21: #{tpu_custom_call.1} parent=11 // pred_check
          %p282 = pneg %p167
        $region22: #{tpu_custom_call.1} parent=11 // pred_check_branch
          %284 = sbr.rel (%p282) target = $region24
        $region23: #{tpu_custom_call.1} parent=11 // pred_region
          %s286 = ssub.s32 512, 512
          %287 = vsyncadd [#allocation6], %s286
          %s288 = sshll.u32 [#allocation7], 4
          %s289 = int_to_ptr.vmem [resolvable:$true] %s288
          %294 = dma.hbm_to_vmem [thread:$0]  %s5, 512, %s289, [#allocation6], 128, 128, 8
        $region24: #{tpu_custom_call.1} parent=11 // pred_fallthru
          _
        // Predicated region
        $region25: #{tpu_custom_call.1} parent=11 // pred_check
          %p295 = pneg %p188
        $region26: #{tpu_custom_call.1} parent=11 // pred_check_branch
          %297 = sbr.rel (%p295) target = $region28
        $region27: #{tpu_custom_call.1} parent=11 // pred_region
          %s299 = ssub.s32 512, 512
          %300 = vsyncadd [#allocation9], %s299
          %s301 = sshll.u32 [#allocation8], 4
          %s302 = int_to_ptr.vmem [resolvable:$true] %s301
          %307 = dma.hbm_to_vmem [thread:$0]  %s6, 512, %s302, [#allocation9], 128, 128, 8
        $region28: #{tpu_custom_call.1} parent=11 // pred_fallthru
          _
        // Predicated region
        $region29: #{tpu_custom_call.1} parent=11 // pred_check
          %p308 = pneg %p209
        $region30: #{tpu_custom_call.1} parent=11 // pred_check_branch
          %310 = sbr.rel (%p308) target = $region32
        $region31: #{tpu_custom_call.1} parent=11 // pred_region
          _
        $region32: #{tpu_custom_call.1} parent=11 // pred_fallthru
          _
      $region12: #{tpu_custom_call.1} parent=5 // pred_fallthru
        _
      %p311 = scmp.lt.s32.totalorder %s26, 3
      // Predicated region
      $region33: #{tpu_custom_call.1} parent=5 // pred_check
        %p312 = pneg %p311
      $region34: #{tpu_custom_call.1} parent=5 // pred_check_branch
        %314 = sbr.rel (%p312) target = $region36
      $region35: #{tpu_custom_call.1} parent=5 // pred_region
        // Predicated region
        $region37: #{tpu_custom_call.1} parent=35 // pred_check
          %p315 = pneg %p46
        $region38: #{tpu_custom_call.1} parent=35 // pred_check_branch
          %317 = sbr.rel (%p315) target = $region40
        $region39: #{tpu_custom_call.1} parent=35 // pred_region
          %s318 = sand.u32 %s36, 1
          %s319 = scalar_lea.sflag [#allocation3], %s318
          %s320 = sand.u32 %s36, 1
          %s321 = smul.addr %s320, 8
          %s322 = scalar_lea.vmem [#allocation2], %s321
          %s324 = ssub.s32 128, 128
          %325 = vsyncadd %s319, %s324
          %s326 = smul.addr %s26, 128
          %s327 = scalar_lea.hbm %s0, %s326
          %s329 = sshll.u32 %s322, 4
          %s330 = int_to_ptr.vmem [resolvable:$true] %s329
          %332 = dma.hbm_to_vmem [thread:$0]  %s327, 128, %s330, %s319
        $region40: #{tpu_custom_call.1} parent=35 // pred_fallthru
          _
        // Predicated region
        $region41: #{tpu_custom_call.1} parent=35 // pred_check
          %p333 = pneg %p72
        $region42: #{tpu_custom_call.1} parent=35 // pred_check_branch
          %335 = sbr.rel (%p333) target = $region44
        $region43: #{tpu_custom_call.1} parent=35 // pred_region
          %s336 = sand.u32 %s26, 1
          %s337 = scalar_lea.sflag [#allocation6], %s336
          %s338 = sand.u32 %s62, 1
          %s339 = smul.addr %s338, 128
          %s340 = scalar_lea.vmem [#allocation5], %s339
          %s341 = smul.u32 8, %s26
          %s343 = ssub.s32 2048, 2048
          %344 = vsyncadd %s337, %s343
          %s345 = smul.addr %s341, 2
          %s346 = smul.addr %s345, 128
          %s347 = scalar_lea.hbm %s1, %s346
          %s348 = sshll.u32 %s340, 4
          %s349 = int_to_ptr.vmem [resolvable:$true] %s348
          %354 = dma.hbm_to_vmem [thread:$0]  %s347, 2048, %s349, %s337, 128, 128, 8
        $region44: #{tpu_custom_call.1} parent=35 // pred_fallthru
          _
        // Predicated region
        $region45: #{tpu_custom_call.1} parent=35 // pred_check
          %p355 = pneg %p98
        $region46: #{tpu_custom_call.1} parent=35 // pred_check_branch
          %357 = sbr.rel (%p355) target = $region48
        $region47: #{tpu_custom_call.1} parent=35 // pred_region
          %p358 = scmp.lt.s32.totalorder %s26, 2
          %s359 = scalar_select %p358, %s26, 2
          %s360 = smul.addr %s359, 8
          %s361 = scalar_lea.vmem %s2, %s360
        $region48: #{tpu_custom_call.1} parent=35 // pred_fallthru
          _
      $region36: #{tpu_custom_call.1} parent=5 // pred_fallthru
        _
      %p362 = scmp.le.s32.totalorder 1, %s26
      %p363 = scmp.lt.s32.totalorder %s26, 4
      %p364 = pnand %p362, %p363
      %p365 = pneg %p364
      // Predicated region
      $region49: #{tpu_custom_call.1} parent=5 // pred_check
        _
      $region50: #{tpu_custom_call.1} parent=5 // pred_check_branch
        %367 = sbr.rel (%p364) target = $region52
      $region51: #{tpu_custom_call.1} parent=5 // pred_region
        %s368 = ssub.s32 %s26, 1
        %s369 = sand.u32 %s39, 1
        %s370 = scalar_lea.sflag [#allocation3], %s369
        %s371 = sand.u32 %s39, 1
        %s372 = smul.addr %s371, 8
        %s373 = scalar_lea.vmem [#allocation2], %s372
        // Predicated region
        $region53: #{tpu_custom_call.1} parent=51 // pred_check
          %p374 = pneg %p52
        $region54: #{tpu_custom_call.1} parent=51 // pred_check_branch
          %376 = sbr.rel (%p374) target = $region56
        $region55: #{tpu_custom_call.1} parent=51 // pred_region
          %377 = dma.done %s370, 128
        $region56: #{tpu_custom_call.1} parent=51 // pred_fallthru
          _
        %s378 = sand.u32 %s31, 1
        %s379 = scalar_lea.sflag [#allocation6], %s378
        %s380 = sand.u32 %s65, 1
        %s381 = smul.addr %s380, 128
        %s382 = scalar_lea.vmem [#allocation5], %s381
        // Predicated region
        $region57: #{tpu_custom_call.1} parent=51 // pred_check
          %p383 = pneg %p78
        $region58: #{tpu_custom_call.1} parent=51 // pred_check_branch
          %385 = sbr.rel (%p383) target = $region60
        $region59: #{tpu_custom_call.1} parent=51 // pred_region
          %386 = dma.done %s379, 2048
        $region60: #{tpu_custom_call.1} parent=51 // pred_fallthru
          _
        // Predicated region
        $region61: #{tpu_custom_call.1} parent=51 // pred_check
          %p387 = pneg %p167
        $region62: #{tpu_custom_call.1} parent=51 // pred_check_branch
          %389 = sbr.rel (%p387) target = $region64
        $region63: #{tpu_custom_call.1} parent=51 // pred_region
          %390 = dma.done [#allocation6], 512
        $region64: #{tpu_custom_call.1} parent=51 // pred_fallthru
          _
        // Predicated region
        $region65: #{tpu_custom_call.1} parent=51 // pred_check
          %p391 = pneg %p188
        $region66: #{tpu_custom_call.1} parent=51 // pred_check_branch
          %393 = sbr.rel (%p391) target = $region68
        $region67: #{tpu_custom_call.1} parent=51 // pred_region
          %394 = dma.done [#allocation9], 512
        $region68: #{tpu_custom_call.1} parent=51 // pred_fallthru
          _
        %s395 = sand.u32 %s39, 1
        %s396 = scalar_lea.sflag [#allocation3], %s395
        %s397 = sand.u32 %s39, 1
        %s398 = smul.addr %s397, 8
        %s399 = scalar_lea.vmem [#allocation2], %s398
        %p400 = pneg %p52
        %p401 = pneg %p49
        %s402 = sand.u32 %s31, 1
        %s403 = scalar_lea.sflag [#allocation6], %s402
        %s404 = sand.u32 %s65, 1
        %s405 = smul.addr %s404, 128
        %s406 = scalar_lea.vmem [#allocation5], %s405
        %p407 = pneg %p78
        %p408 = pneg %p75
        %p409 = scmp.lt.s32.totalorder %s31, 2
        %s410 = scalar_select %p409, %s31, 2
        %s411 = smul.addr %s410, 8
        %s412 = scalar_lea.vmem %s2, %s411
        %p413 = pneg %p104
        %p414 = pneg %p101
        %p415 = pneg %p125
        %p416 = pneg %p122
        %p417 = pneg %p146
        %p418 = pneg %p143
        %p419 = pneg %p167
        %p420 = pneg %p164
        %p421 = pneg %p188
        %p422 = pneg %p185
        %p423 = pneg %p209
        %p424 = pneg %p206
        %p425 = pneg %p235
        %p426 = pneg %p232
        %s427 = sand.u32 %s222, 1
        %s428 = scalar_lea.sflag [#allocation4], %s427
        %s429 = sand.u32 %s222, 1
        %s430 = smul.addr %s429, 8
        %s431 = scalar_lea.vmem [#allocation10], %s430
        %p432 = pneg %p261
        %p433 = pneg %p258
        %p434 = scmp.lt.s32.totalorder %s31, 2
        %s435 = scalar_select %p434, %s31, 2
        %s436 = smul.addr %s435, 8
        %s437 = scalar_lea.vmem %s9, %s436
        %s438 = smul.u32 8, %s31
        %p439 = scmp.lt.s32.totalorder %s31, 2
        %s440 = scalar_select %p439, %s31, 2
        %s441 = smul.addr %s440, 8
        %s442 = scalar_lea.vmem %s2, %s441
        %p443 = scmp.lt.s32.totalorder %s31, 2
        %s444 = scalar_select %p443, %s31, 2
        %s445 = smul.addr %s444, 8
        %s446 = scalar_lea.vmem %s9, %s445
        %v447 = vld [vmem:[%s373] sm:$0xff]
        %v448 = vld [vmem:[%s382] sm:$0xff]
        %v449 = vld [vmem:[%s382 + $0x8] sm:$0xff]
        %v450 = vld [vmem:[%s382 + $0x10] sm:$0xff]
        %v451 = vld [vmem:[%s382 + $0x18] sm:$0xff]
        %v452 = vld [vmem:[%s382 + $0x20] sm:$0xff]
        %v453 = vld [vmem:[%s382 + $0x28] sm:$0xff]
        %v454 = vld [vmem:[%s382 + $0x30] sm:$0xff]
        %v455 = vld [vmem:[%s382 + $0x38] sm:$0xff]
        %v456 = vld [vmem:[%s382 + $0x40] sm:$0xff]
        %v457 = vld [vmem:[%s382 + $0x48] sm:$0xff]
        %v458 = vld [vmem:[%s382 + $0x50] sm:$0xff]
        %v459 = vld [vmem:[%s382 + $0x58] sm:$0xff]
        %v460 = vld [vmem:[%s382 + $0x60] sm:$0xff]
        %v461 = vld [vmem:[%s382 + $0x68] sm:$0xff]
        %v462 = vld [vmem:[%s382 + $0x70] sm:$0xff]
        %v463 = vld [vmem:[%s382 + $0x78] sm:$0xff]
        %v464 = vld [vmem:[%s442] sm:$0xff]
        %vm465 = vcmp.gt.f32.partialorder %v464, 0.5
        %v466 = vld [vmem:[%s3] sm:$0xff]
        %v467 = vld [vmem:[%s3 + $0x8] sm:$0xff]
        %v468 = vld [vmem:[#allocation7] sm:$0xff]
        %v469 = vld [vmem:[#allocation7 + $0x8] sm:$0xff]
        %v470 = vld [vmem:[#allocation8] sm:$0xff]
        %v471 = vld [vmem:[#allocation8 + $0x8] sm:$0xff]
        %v472 = vld [vmem:[%s4] sm:$0x1]
        %v473 = vld [vmem:[%s7] sm:$0x1]
        %v475 = vlaneseq
        %v476 = vshrl.u32 %v475, 7
        %v477 = vsub.s32 0, %v476
        %v478 = vrot.slane %v472, %v477
        %vm480 = vcmask 261120
        %v482 = vsel %vm480, %v447, 0
        %v485 = vsel %vm480, %v466, 0
        %v488 = vsel %vm480, %v467, 0
        %490 = vmatprep.subr.mxu0 0.0
        %491 = vmatpush1.xpose.msra.mxu0 %v485
        %492 = vmatprep.subr.mxu0 0.0
        %493 = vmatpush1.xpose.msra.mxu0 %v488
        %494 = vmatprep.subr.mxu0 0.0
        %495 = vmatpush1.xpose.msra.mxu0 0.0
        %496 = vmatprep.subr.mxu0 0.0
        %497 = vmatpush1.xpose.msra.mxu0 0.0
        %498 = vmatprep.subr.mxu0 0.0
        %499 = vmatpush1.xpose.msra.mxu0 0.0
        %500 = vmatprep.subr.mxu0 0.0
        %501 = vmatpush1.xpose.msra.mxu0 0.0
        %502 = vmatprep.subr.mxu0 0.0
        %503 = vmatpush1.xpose.msra.mxu0 0.0
        %504 = vmatprep.subr.mxu0 0.0
        %505 = vmatpush1.xpose.msra.mxu0 0.0
        %506 = vmatprep.subr.mxu0 0.0
        %507 = vmatpush1.xpose.msra.mxu0 0.0
        %508 = vmatprep.subr.mxu0 0.0
        %509 = vmatpush1.xpose.msra.mxu0 0.0
        %510 = vmatprep.subr.mxu0 0.0
        %511 = vmatpush1.xpose.msra.mxu0 0.0
        %512 = vmatprep.subr.mxu0 0.0
        %513 = vmatpush1.xpose.msra.mxu0 0.0
        %514 = vmatprep.subr.mxu0 0.0
        %515 = vmatpush1.xpose.msra.mxu0 0.0
        %516 = vmatprep.subr.mxu0 0.0
        %517 = vmatpush1.xpose.msra.mxu0 0.0
        %518 = vmatprep.subr.mxu0 0.0
        %519 = vmatpush1.xpose.msra.mxu0 0.0
        %520 = vmatprep.subr.mxu0 0.0
        %521 = vmatpush1.xpose.msra.mxu0 0.0
        %522 = vmatprep.subr.mxu0 0.0
        %523 = vmatpush1.xpose.msra.mxu0 0.0
        %524 = vmatprep.subr.mxu0 0.0
        %525 = vmatpush1.xpose.msra.mxu0 0.0
        %526 = vmatprep.subr.mxu0 0.0
        %527 = vmatpush1.xpose.msra.mxu0 0.0
        %528 = vmatprep.subr.mxu0 0.0
        %529 = vmatpush1.xpose.msra.mxu0 0.0
        %530 = vmatprep.subr.mxu0 0.0
        %531 = vmatpush1.xpose.msra.mxu0 0.0
        %532 = vmatprep.subr.mxu0 0.0
        %533 = vmatpush1.xpose.msra.mxu0 0.0
        %534 = vmatprep.subr.mxu0 0.0
        %535 = vmatpush1.xpose.msra.mxu0 0.0
        %536 = vmatprep.subr.mxu0 0.0
        %537 = vmatpush1.xpose.msra.mxu0 0.0
        %538 = vmatprep.subr.mxu0 0.0
        %539 = vmatpush1.xpose.msra.mxu0 0.0
        %540 = vmatprep.subr.mxu0 0.0
        %541 = vmatpush1.xpose.msra.mxu0 0.0
        %542 = vmatprep.subr.mxu0 0.0
        %543 = vmatpush1.xpose.msra.mxu0 0.0
        %544 = vmatprep.subr.mxu0 0.0
        %545 = vmatpush1.xpose.msra.mxu0 0.0
        %546 = vmatprep.subr.mxu0 0.0
        %547 = vmatpush1.xpose.msra.mxu0 0.0
        %548 = vmatprep.subr.mxu0 0.0
        %549 = vmatpush1.xpose.msra.mxu0 0.0
        %550 = vmatprep.subr.mxu0 0.0
        %551 = vmatpush1.xpose.msra.mxu0 0.0
        %552 = vmatprep.subr.mxu0 0.0
        %553 = vmatpush1.xpose.msra.mxu0 0.0
        %554 = vmatprep.mubr.f32.mxu0 0.0
        %555 = vmatmul.mubr.f32.gmra.mrb[0].mxu0 %v482
        %v556 = vpop.f32.mrb[0].mxu0
        %v557 = vadd.f32 %v478, %v556
        %v558 = vpop.f32.mrb[0].mxu0
        %559 = vdwg.mxu0
        %v560 = vmul.f32 %v557, 0.25
        %vm561 = vcmask 130048
        %v563 = vsel %vm561, %v560, 0
        %565 = vmatprep.subr.mxu0 0.0
        %566 = vmatpush1.msra.mxu0 %v468
        %567 = vmatprep.subr.mxu0 0.0
        %568 = vmatpush1.msra.mxu0 %v469
        %569 = vmatprep.subr.mxu0 0.0
        %570 = vmatpush1.msra.mxu0 0.0
        %571 = vmatprep.subr.mxu0 0.0
        %572 = vmatpush1.msra.mxu0 0.0
        %573 = vmatprep.subr.mxu0 0.0
        %574 = vmatpush1.msra.mxu0 0.0
        %575 = vmatprep.subr.mxu0 0.0
        %576 = vmatpush1.msra.mxu0 0.0
        %577 = vmatprep.subr.mxu0 0.0
        %578 = vmatpush1.msra.mxu0 0.0
        %579 = vmatprep.subr.mxu0 0.0
        %580 = vmatpush1.msra.mxu0 0.0
        %581 = vmatprep.subr.mxu0 0.0
        %582 = vmatpush1.msra.mxu0 0.0
        %583 = vmatprep.subr.mxu0 0.0
        %584 = vmatpush1.msra.mxu0 0.0
        %585 = vmatprep.subr.mxu0 0.0
        %586 = vmatpush1.msra.mxu0 0.0
        %587 = vmatprep.subr.mxu0 0.0
        %588 = vmatpush1.msra.mxu0 0.0
        %589 = vmatprep.subr.mxu0 0.0
        %590 = vmatpush1.msra.mxu0 0.0
        %591 = vmatprep.subr.mxu0 0.0
        %592 = vmatpush1.msra.mxu0 0.0
        %593 = vmatprep.subr.mxu0 0.0
        %594 = vmatpush1.msra.mxu0 0.0
        %595 = vmatprep.subr.mxu0 0.0
        %596 = vmatpush1.msra.mxu0 0.0
        %597 = vmatprep.subr.mxu0 0.0
        %598 = vmatpush1.msra.mxu0 0.0
        %599 = vmatprep.subr.mxu0 0.0
        %600 = vmatpush1.msra.mxu0 0.0
        %601 = vmatprep.subr.mxu0 0.0
        %602 = vmatpush1.msra.mxu0 0.0
        %603 = vmatprep.subr.mxu0 0.0
        %604 = vmatpush1.msra.mxu0 0.0
        %605 = vmatprep.subr.mxu0 0.0
        %606 = vmatpush1.msra.mxu0 0.0
        %607 = vmatprep.subr.mxu0 0.0
        %608 = vmatpush1.msra.mxu0 0.0
        %609 = vmatprep.subr.mxu0 0.0
        %610 = vmatpush1.msra.mxu0 0.0
        %611 = vmatprep.subr.mxu0 0.0
        %612 = vmatpush1.msra.mxu0 0.0
        %613 = vmatprep.subr.mxu0 0.0
        %614 = vmatpush1.msra.mxu0 0.0
        %615 = vmatprep.subr.mxu0 0.0
        %616 = vmatpush1.msra.mxu0 0.0
        %617 = vmatprep.subr.mxu0 0.0
        %618 = vmatpush1.msra.mxu0 0.0
        %619 = vmatprep.subr.mxu0 0.0
        %620 = vmatpush1.msra.mxu0 0.0
        %621 = vmatprep.subr.mxu0 0.0
        %622 = vmatpush1.msra.mxu0 0.0
        %623 = vmatprep.subr.mxu0 0.0
        %624 = vmatpush1.msra.mxu0 0.0
        %625 = vmatprep.subr.mxu0 0.0
        %626 = vmatpush1.msra.mxu0 0.0
        %627 = vmatprep.subr.mxu0 0.0
        %628 = vmatpush1.msra.mxu0 0.0
        %629 = vmatprep.mubr.f32.mxu0 0.0
        %630 = vmatmul.mubr.f32.gmra.mrb[0].mxu0 %v563
        %v631 = vpop.f32.mrb[0].mxu0
        %v632 = vadd.f32 0.0, %v631
        %v633 = vpop.f32.mrb[0].mxu0
        %634 = vdwg.mxu0
        %v636 = vcombine.high %v632, %v632
        %v638 = vunpack.c.l.s4 1966171168
        %v639 = vunpack.c.0.s8 %v638
        %v640 = vlaneseq
        %v641 = vshrl.u32 %v640, 7
        %v642 = vsub.s32 %v639, %v641
        %v643 = vrot.slane %v632, %v642
        %v645 = vunpack.c.l.s4 1966171168
        %v646 = vunpack.c.0.s8 %v645
        %v647 = vlaneseq
        %v648 = vshrl.u32 %v647, 7
        %v649 = vsub.s32 %v646, %v648
        %v650 = vrot.slane %v636, %v649
        %v651 = vcombine.high %v643, %v643
        %v652 = vcombine.high %v650, %v650
        %v654 = vunpack.c.l.s4 1966171168
        %v655 = vunpack.c.0.s8 %v654
        %v656 = vlaneseq
        %v657 = vshrl.u32 %v656, 7
        %v658 = vsub.s32 %v655, %v657
        %v659 = vrot.slane %v643, %v658
        %v661 = vunpack.c.l.s4 1966171168
        %v662 = vunpack.c.0.s8 %v661
        %v663 = vlaneseq
        %v664 = vshrl.u32 %v663, 7
        %v665 = vsub.s32 %v662, %v664
        %v666 = vrot.slane %v650, %v665
        %v668 = vunpack.c.l.s4 1966171168
        %v669 = vunpack.c.0.s8 %v668
        %v670 = vlaneseq
        %v671 = vshrl.u32 %v670, 7
        %v672 = vsub.s32 %v669, %v671
        %v673 = vrot.slane %v651, %v672
        %v675 = vunpack.c.l.s4 1966171168
        %v676 = vunpack.c.0.s8 %v675
        %v677 = vlaneseq
        %v678 = vshrl.u32 %v677, 7
        %v679 = vsub.s32 %v676, %v678
        %v680 = vrot.slane %v652, %v679
        %v681 = vcombine.high %v659, %v659
        %v682 = vcombine.high %v666, %v666
        %v683 = vcombine.high %v673, %v673
        %v684 = vcombine.high %v680, %v680
        %v685 = vlaneseq
        %v686 = vshrl.u32 %v685, 7
        %v687 = vsub.s32 0, %v686
        %v688 = vrot.slane %v659, %v687
        %v689 = vlaneseq
        %v690 = vshrl.u32 %v689, 7
        %v691 = vsub.s32 0, %v690
        %v692 = vrot.slane %v673, %v691
        %v693 = vlaneseq
        %v694 = vshrl.u32 %v693, 7
        %v695 = vsub.s32 0, %v694
        %v696 = vrot.slane %v681, %v695
        %v697 = vlaneseq
        %v698 = vshrl.u32 %v697, 7
        %v699 = vsub.s32 0, %v698
        %v700 = vrot.slane %v683, %v699
        %v701 = vlaneseq
        %v702 = vshrl.u32 %v701, 7
        %v703 = vsub.s32 0, %v702
        %v704 = vrot.slane %v666, %v703
        %v705 = vlaneseq
        %v706 = vshrl.u32 %v705, 7
        %v707 = vsub.s32 0, %v706
        %v708 = vrot.slane %v680, %v707
        %v709 = vlaneseq
        %v710 = vshrl.u32 %v709, 7
        %v711 = vsub.s32 0, %v710
        %v712 = vrot.slane %v682, %v711
        %v713 = vlaneseq
        %v714 = vshrl.u32 %v713, 7
        %v715 = vsub.s32 0, %v714
        %v716 = vrot.slane %v684, %v715
        %v725 = vmul.f32 %v448, %v688
        %v726 = vmul.f32 %v449, %v688
        %v727 = vmul.f32 %v450, %v692
        %v728 = vmul.f32 %v451, %v692
        %v729 = vmul.f32 %v452, %v696
        %v730 = vmul.f32 %v453, %v696
        %v731 = vmul.f32 %v454, %v700
        %v732 = vmul.f32 %v455, %v700
        %v733 = vmul.f32 %v456, %v704
        %v734 = vmul.f32 %v457, %v704
        %v735 = vmul.f32 %v458, %v708
        %v736 = vmul.f32 %v459, %v708
        %v737 = vmul.f32 %v460, %v712
        %v738 = vmul.f32 %v461, %v712
        %v739 = vmul.f32 %v462, %v716
        %v740 = vmul.f32 %v463, %v716
        %v741 = vsel %vm480, %v725, 0.0
        %742 = vadd.xlane.f32.xlu0 %v741
        %v743 = vpop.xlane.xlu0 %742
        %v744 = vsel %vm480, %v726, 0.0
        %745 = vadd.xlane.f32.xlu0 %v744
        %v746 = vpop.xlane.xlu0 %745
        %v747 = vsel %vm480, %v727, 0.0
        %748 = vadd.xlane.f32.xlu0 %v747
        %v749 = vpop.xlane.xlu0 %748
        %v750 = vsel %vm480, %v728, 0.0
        %751 = vadd.xlane.f32.xlu0 %v750
        %v752 = vpop.xlane.xlu0 %751
        %v753 = vsel %vm480, %v729, 0.0
        %754 = vadd.xlane.f32.xlu0 %v753
        %v755 = vpop.xlane.xlu0 %754
        %v756 = vsel %vm480, %v730, 0.0
        %757 = vadd.xlane.f32.xlu0 %v756
        %v758 = vpop.xlane.xlu0 %757
        %v759 = vsel %vm480, %v731, 0.0
        %760 = vadd.xlane.f32.xlu0 %v759
        %v761 = vpop.xlane.xlu0 %760
        %v762 = vsel %vm480, %v732, 0.0
        %763 = vadd.xlane.f32.xlu0 %v762
        %v764 = vpop.xlane.xlu0 %763
        %v765 = vsel %vm480, %v733, 0.0
        %766 = vadd.xlane.f32.xlu0 %v765
        %v767 = vpop.xlane.xlu0 %766
        %v768 = vsel %vm480, %v734, 0.0
        %769 = vadd.xlane.f32.xlu0 %v768
        %v770 = vpop.xlane.xlu0 %769
        %v771 = vsel %vm480, %v735, 0.0
        %772 = vadd.xlane.f32.xlu0 %v771
        %v773 = vpop.xlane.xlu0 %772
        %v774 = vsel %vm480, %v736, 0.0
        %775 = vadd.xlane.f32.xlu0 %v774
        %v776 = vpop.xlane.xlu0 %775
        %v777 = vsel %vm480, %v737, 0.0
        %778 = vadd.xlane.f32.xlu0 %v777
        %v779 = vpop.xlane.xlu0 %778
        %v780 = vsel %vm480, %v738, 0.0
        %781 = vadd.xlane.f32.xlu0 %v780
        %v782 = vpop.xlane.xlu0 %781
        %v783 = vsel %vm480, %v739, 0.0
        %784 = vadd.xlane.f32.xlu0 %v783
        %v785 = vpop.xlane.xlu0 %784
        %v786 = vsel %vm480, %v740, 0.0
        %787 = vadd.xlane.f32.xlu0 %v786
        %v788 = vpop.xlane.xlu0 %787
        %v805 = vlaneseq
        %v806 = vand.u32 %v805, 127
        %v807 = vlaneseq
        %v808 = vshrl.u32 %v807, 7
        %v809 = vsub.s32 %v806, %v808
        %v810 = vrot.slane %v743, %v809
        %v811 = vadd.s32 %v806, 4294967288
        %v812 = vlaneseq
        %v813 = vshrl.u32 %v812, 7
        %v814 = vsub.s32 %v811, %v813
        %v815 = vrot.slane %v746, %v814
        %vm816 = vcmask 130112
        %v817 = vsel %vm816, %v815, %v810
        %v818 = vlaneseq
        %v819 = vshrl.u32 %v818, 7
        %v820 = vsub.s32 %v806, %v819
        %v821 = vrot.slane %v749, %v820
        %v822 = vlaneseq
        %v823 = vshrl.u32 %v822, 7
        %v824 = vsub.s32 %v811, %v823
        %v825 = vrot.slane %v752, %v824
        %v826 = vsel %vm816, %v825, %v821
        %v827 = vlaneseq
        %v828 = vshrl.u32 %v827, 7
        %v829 = vsub.s32 %v806, %v828
        %v830 = vrot.slane %v755, %v829
        %v831 = vlaneseq
        %v832 = vshrl.u32 %v831, 7
        %v833 = vsub.s32 %v811, %v832
        %v834 = vrot.slane %v758, %v833
        %v835 = vsel %vm816, %v834, %v830
        %v836 = vlaneseq
        %v837 = vshrl.u32 %v836, 7
        %v838 = vsub.s32 %v806, %v837
        %v839 = vrot.slane %v761, %v838
        %v840 = vlaneseq
        %v841 = vshrl.u32 %v840, 7
        %v842 = vsub.s32 %v811, %v841
        %v843 = vrot.slane %v764, %v842
        %v844 = vsel %vm816, %v843, %v839
        %v845 = vlaneseq
        %v846 = vshrl.u32 %v845, 7
        %v847 = vsub.s32 %v806, %v846
        %v848 = vrot.slane %v767, %v847
        %v849 = vlaneseq
        %v850 = vshrl.u32 %v849, 7
        %v851 = vsub.s32 %v811, %v850
        %v852 = vrot.slane %v770, %v851
        %v853 = vsel %vm816, %v852, %v848
        %v854 = vlaneseq
        %v855 = vshrl.u32 %v854, 7
        %v856 = vsub.s32 %v806, %v855
        %v857 = vrot.slane %v773, %v856
        %v858 = vlaneseq
        %v859 = vshrl.u32 %v858, 7
        %v860 = vsub.s32 %v811, %v859
        %v861 = vrot.slane %v776, %v860
        %v862 = vsel %vm816, %v861, %v857
        %v863 = vlaneseq
        %v864 = vshrl.u32 %v863, 7
        %v865 = vsub.s32 %v806, %v864
        %v866 = vrot.slane %v779, %v865
        %v867 = vlaneseq
        %v868 = vshrl.u32 %v867, 7
        %v869 = vsub.s32 %v811, %v868
        %v870 = vrot.slane %v782, %v869
        %v871 = vsel %vm816, %v870, %v866
        %v872 = vlaneseq
        %v873 = vshrl.u32 %v872, 7
        %v874 = vsub.s32 %v806, %v873
        %v875 = vrot.slane %v785, %v874
        %v876 = vlaneseq
        %v877 = vshrl.u32 %v876, 7
        %v878 = vsub.s32 %v811, %v877
        %v879 = vrot.slane %v788, %v878
        %v880 = vsel %vm816, %v879, %v875
        %vm881 = vcmask 1041409
        %v882 = vsel %vm881, %v826, %v817
        %vm883 = vcmask 1042434
        %v884 = vsel %vm883, %v835, %v882
        %vm885 = vcmask 1043459
        %v886 = vsel %vm885, %v844, %v884
        %vm887 = vcmask 1044484
        %v888 = vsel %vm887, %v853, %v886
        %vm889 = vcmask 1045509
        %v890 = vsel %vm889, %v862, %v888
        %vm891 = vcmask 1046534
        %v892 = vsel %vm891, %v871, %v890
        %vm893 = vcmask 1047559
        %v894 = vsel %vm893, %v880, %v892
        %v896 = vsel %vm465, -1e+30, %v894
        %v897 = vsel %vm561, %v896, -inf
        %898 = vmax.xlane.f32.xlu0 %v897
        %v899 = vpop.xlane.xlu0 %898
        %v900 = vsub.f32 %v896, %v899
        %v901 = vmul.f32 %v900, 1.442695
        %v902 = vpow.pop %v901
        %v903 = vsel %vm561, %v902, 0.0
        %904 = vadd.xlane.f32.xlu0 %v903
        %v905 = vpop.xlane.xlu0 %904
        %v906 = vrcp.pop %v905
        %v907 = vmul.f32 %v902, %v906
        %v908 = vlaneseq
        %v909 = vshrl.u32 %v908, 7
        %v910 = vsub.s32 0, %v909
        %v911 = vrot.slane %v907, %v910
        %913 = vbcast.lane.b32.xlu0 %v911, 256
        %v914 = vpop.permute.xlu0 %913
        %s916 = sor.u32 256, 8
        %917 = vbcast.lane.b32.xlu0 %v911, %s916
        %v918 = vpop.permute.xlu0 %917
        %v919 = vlaneseq
        %v920 = vshrl.u32 %v919, 7
        %v921 = vsub.s32 1, %v920
        %v922 = vrot.slane %v907, %v921
        %924 = vbcast.lane.b32.xlu0 %v922, 256
        %v925 = vpop.permute.xlu0 %924
        %s927 = sor.u32 256, 8
        %928 = vbcast.lane.b32.xlu0 %v922, %s927
        %v929 = vpop.permute.xlu0 %928
        %v930 = vlaneseq
        %v931 = vshrl.u32 %v930, 7
        %v932 = vsub.s32 2, %v931
        %v933 = vrot.slane %v907, %v932
        %935 = vbcast.lane.b32.xlu0 %v933, 256
        %v936 = vpop.permute.xlu0 %935
        %s938 = sor.u32 256, 8
        %939 = vbcast.lane.b32.xlu0 %v933, %s938
        %v940 = vpop.permute.xlu0 %939
        %v941 = vlaneseq
        %v942 = vshrl.u32 %v941, 7
        %v943 = vsub.s32 3, %v942
        %v944 = vrot.slane %v907, %v943
        %946 = vbcast.lane.b32.xlu0 %v944, 256
        %v947 = vpop.permute.xlu0 %946
        %s949 = sor.u32 256, 8
        %950 = vbcast.lane.b32.xlu0 %v944, %s949
        %v951 = vpop.permute.xlu0 %950
        %v952 = vlaneseq
        %v953 = vshrl.u32 %v952, 7
        %v954 = vsub.s32 4, %v953
        %v955 = vrot.slane %v907, %v954
        %957 = vbcast.lane.b32.xlu0 %v955, 256
        %v958 = vpop.permute.xlu0 %957
        %s960 = sor.u32 256, 8
        %961 = vbcast.lane.b32.xlu0 %v955, %s960
        %v962 = vpop.permute.xlu0 %961
        %v963 = vlaneseq
        %v964 = vshrl.u32 %v963, 7
        %v965 = vsub.s32 5, %v964
        %v966 = vrot.slane %v907, %v965
        %968 = vbcast.lane.b32.xlu0 %v966, 256
        %v969 = vpop.permute.xlu0 %968
        %s971 = sor.u32 256, 8
        %972 = vbcast.lane.b32.xlu0 %v966, %s971
        %v973 = vpop.permute.xlu0 %972
        %v974 = vlaneseq
        %v975 = vshrl.u32 %v974, 7
        %v976 = vsub.s32 6, %v975
        %v977 = vrot.slane %v907, %v976
        %979 = vbcast.lane.b32.xlu0 %v977, 256
        %v980 = vpop.permute.xlu0 %979
        %s982 = sor.u32 256, 8
        %983 = vbcast.lane.b32.xlu0 %v977, %s982
        %v984 = vpop.permute.xlu0 %983
        %v985 = vlaneseq
        %v986 = vshrl.u32 %v985, 7
        %v987 = vsub.s32 7, %v986
        %v988 = vrot.slane %v907, %v987
        %990 = vbcast.lane.b32.xlu0 %v988, 256
        %v991 = vpop.permute.xlu0 %990
        %s993 = sor.u32 256, 8
        %994 = vbcast.lane.b32.xlu0 %v988, %s993
        %v995 = vpop.permute.xlu0 %994
        %v996 = vmul.f32 %v914, %v448
        %v997 = vmul.f32 %v918, %v449
        %v998 = vmul.f32 %v925, %v450
        %v999 = vmul.f32 %v929, %v451
        %v1000 = vmul.f32 %v936, %v452
        %v1001 = vmul.f32 %v940, %v453
        %v1002 = vmul.f32 %v947, %v454
        %v1003 = vmul.f32 %v951, %v455
        %v1004 = vmul.f32 %v958, %v456
        %v1005 = vmul.f32 %v962, %v457
        %v1006 = vmul.f32 %v969, %v458
        %v1007 = vmul.f32 %v973, %v459
        %v1008 = vmul.f32 %v980, %v460
        %v1009 = vmul.f32 %v984, %v461
        %v1010 = vmul.f32 %v991, %v462
        %v1011 = vmul.f32 %v995, %v463
        %v1012 = vsel %vm480, %v996, 0.0
        %v1013 = vsel %vm480, %v997, 0.0
        %v1014 = vadd.f32 %v1012, %v1013
        %v1015 = vrot.slane %v1014, 4
        %v1016 = vadd.f32 %v1014, %v1015
        %v1017 = vrot.slane %v1016, 2
        %v1018 = vadd.f32 %v1016, %v1017
        %v1019 = vrot.slane %v1018, 1
        %v1020 = vadd.f32 %v1018, %v1019
        %v1021 = vsel %vm480, %v998, 0.0
        %v1022 = vsel %vm480, %v999, 0.0
        %v1023 = vadd.f32 %v1021, %v1022
        %v1024 = vrot.slane %v1023, 4
        %v1025 = vadd.f32 %v1023, %v1024
        %v1026 = vrot.slane %v1025, 2
        %v1027 = vadd.f32 %v1025, %v1026
        %v1028 = vrot.slane %v1027, 1
        %v1029 = vadd.f32 %v1027, %v1028
        %v1030 = vsel %vm480, %v1000, 0.0
        %v1031 = vsel %vm480, %v1001, 0.0
        %v1032 = vadd.f32 %v1030, %v1031
        %v1033 = vrot.slane %v1032, 4
        %v1034 = vadd.f32 %v1032, %v1033
        %v1035 = vrot.slane %v1034, 2
        %v1036 = vadd.f32 %v1034, %v1035
        %v1037 = vrot.slane %v1036, 1
        %v1038 = vadd.f32 %v1036, %v1037
        %v1039 = vsel %vm480, %v1002, 0.0
        %v1040 = vsel %vm480, %v1003, 0.0
        %v1041 = vadd.f32 %v1039, %v1040
        %v1042 = vrot.slane %v1041, 4
        %v1043 = vadd.f32 %v1041, %v1042
        %v1044 = vrot.slane %v1043, 2
        %v1045 = vadd.f32 %v1043, %v1044
        %v1046 = vrot.slane %v1045, 1
        %v1047 = vadd.f32 %v1045, %v1046
        %v1048 = vsel %vm480, %v1004, 0.0
        %v1049 = vsel %vm480, %v1005, 0.0
        %v1050 = vadd.f32 %v1048, %v1049
        %v1051 = vrot.slane %v1050, 4
        %v1052 = vadd.f32 %v1050, %v1051
        %v1053 = vrot.slane %v1052, 2
        %v1054 = vadd.f32 %v1052, %v1053
        %v1055 = vrot.slane %v1054, 1
        %v1056 = vadd.f32 %v1054, %v1055
        %v1057 = vsel %vm480, %v1006, 0.0
        %v1058 = vsel %vm480, %v1007, 0.0
        %v1059 = vadd.f32 %v1057, %v1058
        %v1060 = vrot.slane %v1059, 4
        %v1061 = vadd.f32 %v1059, %v1060
        %v1062 = vrot.slane %v1061, 2
        %v1063 = vadd.f32 %v1061, %v1062
        %v1064 = vrot.slane %v1063, 1
        %v1065 = vadd.f32 %v1063, %v1064
        %v1066 = vsel %vm480, %v1008, 0.0
        %v1067 = vsel %vm480, %v1009, 0.0
        %v1068 = vadd.f32 %v1066, %v1067
        %v1069 = vrot.slane %v1068, 4
        %v1070 = vadd.f32 %v1068, %v1069
        %v1071 = vrot.slane %v1070, 2
        %v1072 = vadd.f32 %v1070, %v1071
        %v1073 = vrot.slane %v1072, 1
        %v1074 = vadd.f32 %v1072, %v1073
        %v1075 = vsel %vm480, %v1010, 0.0
        %v1076 = vsel %vm480, %v1011, 0.0
        %v1077 = vadd.f32 %v1075, %v1076
        %v1078 = vrot.slane %v1077, 4
        %v1079 = vadd.f32 %v1077, %v1078
        %v1080 = vrot.slane %v1079, 2
        %v1081 = vadd.f32 %v1079, %v1080
        %v1082 = vrot.slane %v1081, 1
        %v1083 = vadd.f32 %v1081, %v1082
        %v1085 = vlaneseq
        %v1086 = vshrl.u32 %v1085, 7
        %v1087 = vsub.s32 0, %v1086
        %v1088 = vrot.slane %v473, %v1087
        %v1098 = vsel %vm881, %v1029, %v1020
        %v1099 = vsel %vm883, %v1038, %v1098
        %v1100 = vsel %vm885, %v1047, %v1099
        %v1101 = vsel %vm887, %v1056, %v1100
        %v1102 = vsel %vm889, %v1065, %v1101
        %v1103 = vsel %vm891, %v1074, %v1102
        %v1104 = vsel %vm893, %v1083, %v1103
        %v1105 = vsel %vm480, %v1104, 0
        %v1108 = vsel %vm480, %v470, 0
        %v1111 = vsel %vm480, %v471, 0
        %1113 = vmatprep.subr.mxu0 0.0
        %1114 = vmatpush1.xpose.msra.mxu0 %v1108
        %1115 = vmatprep.subr.mxu0 0.0
        %1116 = vmatpush1.xpose.msra.mxu0 %v1111
        %1117 = vmatprep.subr.mxu0 0.0
        %1118 = vmatpush1.xpose.msra.mxu0 0.0
        %1119 = vmatprep.subr.mxu0 0.0
        %1120 = vmatpush1.xpose.msra.mxu0 0.0
        %1121 = vmatprep.subr.mxu0 0.0
        %1122 = vmatpush1.xpose.msra.mxu0 0.0
        %1123 = vmatprep.subr.mxu0 0.0
        %1124 = vmatpush1.xpose.msra.mxu0 0.0
        %1125 = vmatprep.subr.mxu0 0.0
        %1126 = vmatpush1.xpose.msra.mxu0 0.0
        %1127 = vmatprep.subr.mxu0 0.0
        %1128 = vmatpush1.xpose.msra.mxu0 0.0
        %1129 = vmatprep.subr.mxu0 0.0
        %1130 = vmatpush1.xpose.msra.mxu0 0.0
        %1131 = vmatprep.subr.mxu0 0.0
        %1132 = vmatpush1.xpose.msra.mxu0 0.0
        %1133 = vmatprep.subr.mxu0 0.0
        %1134 = vmatpush1.xpose.msra.mxu0 0.0
        %1135 = vmatprep.subr.mxu0 0.0
        %1136 = vmatpush1.xpose.msra.mxu0 0.0
        %1137 = vmatprep.subr.mxu0 0.0
        %1138 = vmatpush1.xpose.msra.mxu0 0.0
        %1139 = vmatprep.subr.mxu0 0.0
        %1140 = vmatpush1.xpose.msra.mxu0 0.0
        %1141 = vmatprep.subr.mxu0 0.0
        %1142 = vmatpush1.xpose.msra.mxu0 0.0
        %1143 = vmatprep.subr.mxu0 0.0
        %1144 = vmatpush1.xpose.msra.mxu0 0.0
        %1145 = vmatprep.subr.mxu0 0.0
        %1146 = vmatpush1.xpose.msra.mxu0 0.0
        %1147 = vmatprep.subr.mxu0 0.0
        %1148 = vmatpush1.xpose.msra.mxu0 0.0
        %1149 = vmatprep.subr.mxu0 0.0
        %1150 = vmatpush1.xpose.msra.mxu0 0.0
        %1151 = vmatprep.subr.mxu0 0.0
        %1152 = vmatpush1.xpose.msra.mxu0 0.0
        %1153 = vmatprep.subr.mxu0 0.0
        %1154 = vmatpush1.xpose.msra.mxu0 0.0
        %1155 = vmatprep.subr.mxu0 0.0
        %1156 = vmatpush1.xpose.msra.mxu0 0.0
        %1157 = vmatprep.subr.mxu0 0.0
        %1158 = vmatpush1.xpose.msra.mxu0 0.0
        %1159 = vmatprep.subr.mxu0 0.0
        %1160 = vmatpush1.xpose.msra.mxu0 0.0
        %1161 = vmatprep.subr.mxu0 0.0
        %1162 = vmatpush1.xpose.msra.mxu0 0.0
        %1163 = vmatprep.subr.mxu0 0.0
        %1164 = vmatpush1.xpose.msra.mxu0 0.0
        %1165 = vmatprep.subr.mxu0 0.0
        %1166 = vmatpush1.xpose.msra.mxu0 0.0
        %1167 = vmatprep.subr.mxu0 0.0
        %1168 = vmatpush1.xpose.msra.mxu0 0.0
        %1169 = vmatprep.subr.mxu0 0.0
        %1170 = vmatpush1.xpose.msra.mxu0 0.0
        %1171 = vmatprep.subr.mxu0 0.0
        %1172 = vmatpush1.xpose.msra.mxu0 0.0
        %1173 = vmatprep.subr.mxu0 0.0
        %1174 = vmatpush1.xpose.msra.mxu0 0.0
        %1175 = vmatprep.subr.mxu0 0.0
        %1176 = vmatpush1.xpose.msra.mxu0 0.0
        %1177 = vmatprep.mubr.f32.mxu0 0.0
        %1178 = vmatmul.mubr.f32.gmra.mrb[0].mxu0 %v1105
        %v1179 = vpop.f32.mrb[0].mxu0
        %v1180 = vadd.f32 %v1088, %v1179
        %v1181 = vpop.f32.mrb[0].mxu0
        %1182 = vdwg.mxu0
        %v1183 = vld [vmem:[%s3 + $0x10] sm:$0xff]
        %v1184 = vld [vmem:[%s3 + $0x18] sm:$0xff]
        %v1185 = vld [vmem:[#allocation7 + $0x10] sm:$0xff]
        %v1186 = vld [vmem:[#allocation7 + $0x18] sm:$0xff]
        %v1187 = vld [vmem:[#allocation8 + $0x10] sm:$0xff]
        %v1188 = vld [vmem:[#allocation8 + $0x18] sm:$0xff]
        %v1189 = vld [vmem:[%s4] sm:$0x1]
        %v1190 = vld [vmem:[%s7] sm:$0x1]
        %v1192 = vlaneseq
        %v1193 = vshrl.u32 %v1192, 7
        %v1194 = vsub.s32 0, %v1193
        %v1195 = vrot.slane %v1189, %v1194
        %1196 = vrot.lane.b32.xlu0 %v1195, 112
        %v1197 = vpop.permute.xlu0 %1196
        %v1200 = vsel %vm480, %v1183, 0
        %v1203 = vsel %vm480, %v1184, 0
        %1205 = vmatprep.subr.mxu0 0.0
        %1206 = vmatpush1.xpose.msra.mxu0 %v1200
        %1207 = vmatprep.subr.mxu0 0.0
        %1208 = vmatpush1.xpose.msra.mxu0 %v1203
        %1209 = vmatprep.subr.mxu0 0.0
        %1210 = vmatpush1.xpose.msra.mxu0 0.0
        %1211 = vmatprep.subr.mxu0 0.0
        %1212 = vmatpush1.xpose.msra.mxu0 0.0
        %1213 = vmatprep.subr.mxu0 0.0
        %1214 = vmatpush1.xpose.msra.mxu0 0.0
        %1215 = vmatprep.subr.mxu0 0.0
        %1216 = vmatpush1.xpose.msra.mxu0 0.0
        %1217 = vmatprep.subr.mxu0 0.0
        %1218 = vmatpush1.xpose.msra.mxu0 0.0
        %1219 = vmatprep.subr.mxu0 0.0
        %1220 = vmatpush1.xpose.msra.mxu0 0.0
        %1221 = vmatprep.subr.mxu0 0.0
        %1222 = vmatpush1.xpose.msra.mxu0 0.0
        %1223 = vmatprep.subr.mxu0 0.0
        %1224 = vmatpush1.xpose.msra.mxu0 0.0
        %1225 = vmatprep.subr.mxu0 0.0
        %1226 = vmatpush1.xpose.msra.mxu0 0.0
        %1227 = vmatprep.subr.mxu0 0.0
        %1228 = vmatpush1.xpose.msra.mxu0 0.0
        %1229 = vmatprep.subr.mxu0 0.0
        %1230 = vmatpush1.xpose.msra.mxu0 0.0
        %1231 = vmatprep.subr.mxu0 0.0
        %1232 = vmatpush1.xpose.msra.mxu0 0.0
        %1233 = vmatprep.subr.mxu0 0.0
        %1234 = vmatpush1.xpose.msra.mxu0 0.0
        %1235 = vmatprep.subr.mxu0 0.0
        %1236 = vmatpush1.xpose.msra.mxu0 0.0
        %1237 = vmatprep.subr.mxu0 0.0
        %1238 = vmatpush1.xpose.msra.mxu0 0.0
        %1239 = vmatprep.subr.mxu0 0.0
        %1240 = vmatpush1.xpose.msra.mxu0 0.0
        %1241 = vmatprep.subr.mxu0 0.0
        %1242 = vmatpush1.xpose.msra.mxu0 0.0
        %1243 = vmatprep.subr.mxu0 0.0
        %1244 = vmatpush1.xpose.msra.mxu0 0.0
        %1245 = vmatprep.subr.mxu0 0.0
        %1246 = vmatpush1.xpose.msra.mxu0 0.0
        %1247 = vmatprep.subr.mxu0 0.0
        %1248 = vmatpush1.xpose.msra.mxu0 0.0
        %1249 = vmatprep.subr.mxu0 0.0
        %1250 = vmatpush1.xpose.msra.mxu0 0.0
        %1251 = vmatprep.subr.mxu0 0.0
        %1252 = vmatpush1.xpose.msra.mxu0 0.0
        %1253 = vmatprep.subr.mxu0 0.0
        %1254 = vmatpush1.xpose.msra.mxu0 0.0
        %1255 = vmatprep.subr.mxu0 0.0
        %1256 = vmatpush1.xpose.msra.mxu0 0.0
        %1257 = vmatprep.subr.mxu0 0.0
        %1258 = vmatpush1.xpose.msra.mxu0 0.0
        %1259 = vmatprep.subr.mxu0 0.0
        %1260 = vmatpush1.xpose.msra.mxu0 0.0
        %1261 = vmatprep.subr.mxu0 0.0
        %1262 = vmatpush1.xpose.msra.mxu0 0.0
        %1263 = vmatprep.subr.mxu0 0.0
        %1264 = vmatpush1.xpose.msra.mxu0 0.0
        %1265 = vmatprep.subr.mxu0 0.0
        %1266 = vmatpush1.xpose.msra.mxu0 0.0
        %1267 = vmatprep.subr.mxu0 0.0
        %1268 = vmatpush1.xpose.msra.mxu0 0.0
        %1269 = vmatprep.mubr.f32.mxu0 0.0
        %1270 = vmatmul.mubr.f32.gmra.mrb[0].mxu0 %v482
        %v1271 = vpop.f32.mrb[0].mxu0
        %v1272 = vadd.f32 %v1197, %v1271
        %v1273 = vpop.f32.mrb[0].mxu0
        %1274 = vdwg.mxu0
        %v1275 = vmul.f32 %v1272, 0.25
        %v1277 = vsel %vm561, %v1275, 0
        %1279 = vmatprep.subr.mxu0 0.0
        %1280 = vmatpush1.msra.mxu0 %v1185
        %1281 = vmatprep.subr.mxu0 0.0
        %1282 = vmatpush1.msra.mxu0 %v1186
        %1283 = vmatprep.subr.mxu0 0.0
        %1284 = vmatpush1.msra.mxu0 0.0
        %1285 = vmatprep.subr.mxu0 0.0
        %1286 = vmatpush1.msra.mxu0 0.0
        %1287 = vmatprep.subr.mxu0 0.0
        %1288 = vmatpush1.msra.mxu0 0.0
        %1289 = vmatprep.subr.mxu0 0.0
        %1290 = vmatpush1.msra.mxu0 0.0
        %1291 = vmatprep.subr.mxu0 0.0
        %1292 = vmatpush1.msra.mxu0 0.0
        %1293 = vmatprep.subr.mxu0 0.0
        %1294 = vmatpush1.msra.mxu0 0.0
        %1295 = vmatprep.subr.mxu0 0.0
        %1296 = vmatpush1.msra.mxu0 0.0
        %1297 = vmatprep.subr.mxu0 0.0
        %1298 = vmatpush1.msra.mxu0 0.0
        %1299 = vmatprep.subr.mxu0 0.0
        %1300 = vmatpush1.msra.mxu0 0.0
        %1301 = vmatprep.subr.mxu0 0.0
        %1302 = vmatpush1.msra.mxu0 0.0
        %1303 = vmatprep.subr.mxu0 0.0
        %1304 = vmatpush1.msra.mxu0 0.0
        %1305 = vmatprep.subr.mxu0 0.0
        %1306 = vmatpush1.msra.mxu0 0.0
        %1307 = vmatprep.subr.mxu0 0.0
        %1308 = vmatpush1.msra.mxu0 0.0
        %1309 = vmatprep.subr.mxu0 0.0
        %1310 = vmatpush1.msra.mxu0 0.0
        %1311 = vmatprep.subr.mxu0 0.0
        %1312 = vmatpush1.msra.mxu0 0.0
        %1313 = vmatprep.subr.mxu0 0.0
        %1314 = vmatpush1.msra.mxu0 0.0
        %1315 = vmatprep.subr.mxu0 0.0
        %1316 = vmatpush1.msra.mxu0 0.0
        %1317 = vmatprep.subr.mxu0 0.0
        %1318 = vmatpush1.msra.mxu0 0.0
        %1319 = vmatprep.subr.mxu0 0.0
        %1320 = vmatpush1.msra.mxu0 0.0
        %1321 = vmatprep.subr.mxu0 0.0
        %1322 = vmatpush1.msra.mxu0 0.0
        %1323 = vmatprep.subr.mxu0 0.0
        %1324 = vmatpush1.msra.mxu0 0.0
        %1325 = vmatprep.subr.mxu0 0.0
        %1326 = vmatpush1.msra.mxu0 0.0
        %1327 = vmatprep.subr.mxu0 0.0
        %1328 = vmatpush1.msra.mxu0 0.0
        %1329 = vmatprep.subr.mxu0 0.0
        %1330 = vmatpush1.msra.mxu0 0.0
        %1331 = vmatprep.subr.mxu0 0.0
        %1332 = vmatpush1.msra.mxu0 0.0
        %1333 = vmatprep.subr.mxu0 0.0
        %1334 = vmatpush1.msra.mxu0 0.0
        %1335 = vmatprep.subr.mxu0 0.0
        %1336 = vmatpush1.msra.mxu0 0.0
        %1337 = vmatprep.subr.mxu0 0.0
        %1338 = vmatpush1.msra.mxu0 0.0
        %1339 = vmatprep.subr.mxu0 0.0
        %1340 = vmatpush1.msra.mxu0 0.0
        %1341 = vmatprep.subr.mxu0 0.0
        %1342 = vmatpush1.msra.mxu0 0.0
        %1343 = vmatprep.mubr.f32.mxu0 0.0
        %1344 = vmatmul.mubr.f32.gmra.mrb[0].mxu0 %v1277
        %v1345 = vpop.f32.mrb[0].mxu0
        %v1346 = vadd.f32 0.0, %v1345
        %v1347 = vpop.f32.mrb[0].mxu0
        %1348 = vdwg.mxu0
        %v1350 = vcombine.high %v1346, %v1346
        %v1352 = vunpack.c.l.s4 1966171168
        %v1353 = vunpack.c.0.s8 %v1352
        %v1354 = vlaneseq
        %v1355 = vshrl.u32 %v1354, 7
        %v1356 = vsub.s32 %v1353, %v1355
        %v1357 = vrot.slane %v1346, %v1356
        %v1359 = vunpack.c.l.s4 1966171168
        %v1360 = vunpack.c.0.s8 %v1359
        %v1361 = vlaneseq
        %v1362 = vshrl.u32 %v1361, 7
        %v1363 = vsub.s32 %v1360, %v1362
        %v1364 = vrot.slane %v1350, %v1363
        %v1365 = vcombine.high %v1357, %v1357
        %v1366 = vcombine.high %v1364, %v1364
        %v1368 = vunpack.c.l.s4 1966171168
        %v1369 = vunpack.c.0.s8 %v1368
        %v1370 = vlaneseq
        %v1371 = vshrl.u32 %v1370, 7
        %v1372 = vsub.s32 %v1369, %v1371
        %v1373 = vrot.slane %v1357, %v1372
        %v1375 = vunpack.c.l.s4 1966171168
        %v1376 = vunpack.c.0.s8 %v1375
        %v1377 = vlaneseq
        %v1378 = vshrl.u32 %v1377, 7
        %v1379 = vsub.s32 %v1376, %v1378
        %v1380 = vrot.slane %v1364, %v1379
        %v1382 = vunpack.c.l.s4 1966171168
        %v1383 = vunpack.c.0.s8 %v1382
        %v1384 = vlaneseq
        %v1385 = vshrl.u32 %v1384, 7
        %v1386 = vsub.s32 %v1383, %v1385
        %v1387 = vrot.slane %v1365, %v1386
        %v1389 = vunpack.c.l.s4 1966171168
        %v1390 = vunpack.c.0.s8 %v1389
        %v1391 = vlaneseq
        %v1392 = vshrl.u32 %v1391, 7
        %v1393 = vsub.s32 %v1390, %v1392
        %v1394 = vrot.slane %v1366, %v1393
        %v1395 = vcombine.high %v1373, %v1373
        %v1396 = vcombine.high %v1380, %v1380
        %v1397 = vcombine.high %v1387, %v1387
        %v1398 = vcombine.high %v1394, %v1394
        %v1399 = vlaneseq
        %v1400 = vshrl.u32 %v1399, 7
        %v1401 = vsub.s32 0, %v1400
        %v1402 = vrot.slane %v1373, %v1401
        %v1403 = vlaneseq
        %v1404 = vshrl.u32 %v1403, 7
        %v1405 = vsub.s32 0, %v1404
        %v1406 = vrot.slane %v1387, %v1405
        %v1407 = vlaneseq
        %v1408 = vshrl.u32 %v1407, 7
        %v1409 = vsub.s32 0, %v1408
        %v1410 = vrot.slane %v1395, %v1409
        %v1411 = vlaneseq
        %v1412 = vshrl.u32 %v1411, 7
        %v1413 = vsub.s32 0, %v1412
        %v1414 = vrot.slane %v1397, %v1413
        %v1415 = vlaneseq
        %v1416 = vshrl.u32 %v1415, 7
        %v1417 = vsub.s32 0, %v1416
        %v1418 = vrot.slane %v1380, %v1417
        %v1419 = vlaneseq
        %v1420 = vshrl.u32 %v1419, 7
        %v1421 = vsub.s32 0, %v1420
        %v1422 = vrot.slane %v1394, %v1421
        %v1423 = vlaneseq
        %v1424 = vshrl.u32 %v1423, 7
        %v1425 = vsub.s32 0, %v1424
        %v1426 = vrot.slane %v1396, %v1425
        %v1427 = vlaneseq
        %v1428 = vshrl.u32 %v1427, 7
        %v1429 = vsub.s32 0, %v1428
        %v1430 = vrot.slane %v1398, %v1429
        %v1439 = vmul.f32 %v448, %v1402
        %v1440 = vmul.f32 %v449, %v1402
        %v1441 = vmul.f32 %v450, %v1406
        %v1442 = vmul.f32 %v451, %v1406
        %v1443 = vmul.f32 %v452, %v1410
        %v1444 = vmul.f32 %v453, %v1410
        %v1445 = vmul.f32 %v454, %v1414
        %v1446 = vmul.f32 %v455, %v1414
        %v1447 = vmul.f32 %v456, %v1418
        %v1448 = vmul.f32 %v457, %v1418
        %v1449 = vmul.f32 %v458, %v1422
        %v1450 = vmul.f32 %v459, %v1422
        %v1451 = vmul.f32 %v460, %v1426
        %v1452 = vmul.f32 %v461, %v1426
        %v1453 = vmul.f32 %v462, %v1430
        %v1454 = vmul.f32 %v463, %v1430
        %v1455 = vsel %vm480, %v1439, 0.0
        %1456 = vadd.xlane.f32.xlu0 %v1455
        %v1457 = vpop.xlane.xlu0 %1456
        %v1458 = vsel %vm480, %v1440, 0.0
        %1459 = vadd.xlane.f32.xlu0 %v1458
        %v1460 = vpop.xlane.xlu0 %1459
        %v1461 = vsel %vm480, %v1441, 0.0
        %1462 = vadd.xlane.f32.xlu0 %v1461
        %v1463 = vpop.xlane.xlu0 %1462
        %v1464 = vsel %vm480, %v1442, 0.0
        %1465 = vadd.xlane.f32.xlu0 %v1464
        %v1466 = vpop.xlane.xlu0 %1465
        %v1467 = vsel %vm480, %v1443, 0.0
        %1468 = vadd.xlane.f32.xlu0 %v1467
        %v1469 = vpop.xlane.xlu0 %1468
        %v1470 = vsel %vm480, %v1444, 0.0
        %1471 = vadd.xlane.f32.xlu0 %v1470
        %v1472 = vpop.xlane.xlu0 %1471
        %v1473 = vsel %vm480, %v1445, 0.0
        %1474 = vadd.xlane.f32.xlu0 %v1473
        %v1475 = vpop.xlane.xlu0 %1474
        %v1476 = vsel %vm480, %v1446, 0.0
        %1477 = vadd.xlane.f32.xlu0 %v1476
        %v1478 = vpop.xlane.xlu0 %1477
        %v1479 = vsel %vm480, %v1447, 0.0
        %1480 = vadd.xlane.f32.xlu0 %v1479
        %v1481 = vpop.xlane.xlu0 %1480
        %v1482 = vsel %vm480, %v1448, 0.0
        %1483 = vadd.xlane.f32.xlu0 %v1482
        %v1484 = vpop.xlane.xlu0 %1483
        %v1485 = vsel %vm480, %v1449, 0.0
        %1486 = vadd.xlane.f32.xlu0 %v1485
        %v1487 = vpop.xlane.xlu0 %1486
        %v1488 = vsel %vm480, %v1450, 0.0
        %1489 = vadd.xlane.f32.xlu0 %v1488
        %v1490 = vpop.xlane.xlu0 %1489
        %v1491 = vsel %vm480, %v1451, 0.0
        %1492 = vadd.xlane.f32.xlu0 %v1491
        %v1493 = vpop.xlane.xlu0 %1492
        %v1494 = vsel %vm480, %v1452, 0.0
        %1495 = vadd.xlane.f32.xlu0 %v1494
        %v1496 = vpop.xlane.xlu0 %1495
        %v1497 = vsel %vm480, %v1453, 0.0
        %1498 = vadd.xlane.f32.xlu0 %v1497
        %v1499 = vpop.xlane.xlu0 %1498
        %v1500 = vsel %vm480, %v1454, 0.0
        %1501 = vadd.xlane.f32.xlu0 %v1500
        %v1502 = vpop.xlane.xlu0 %1501
        %v1519 = vlaneseq
        %v1520 = vshrl.u32 %v1519, 7
        %v1521 = vsub.s32 %v806, %v1520
        %v1522 = vrot.slane %v1457, %v1521
        %v1523 = vlaneseq
        %v1524 = vshrl.u32 %v1523, 7
        %v1525 = vsub.s32 %v811, %v1524
        %v1526 = vrot.slane %v1460, %v1525
        %v1527 = vsel %vm816, %v1526, %v1522
        %v1528 = vlaneseq
        %v1529 = vshrl.u32 %v1528, 7
        %v1530 = vsub.s32 %v806, %v1529
        %v1531 = vrot.slane %v1463, %v1530
        %v1532 = vlaneseq
        %v1533 = vshrl.u32 %v1532, 7
        %v1534 = vsub.s32 %v811, %v1533
        %v1535 = vrot.slane %v1466, %v1534
        %v1536 = vsel %vm816, %v1535, %v1531
        %v1537 = vlaneseq
        %v1538 = vshrl.u32 %v1537, 7
        %v1539 = vsub.s32 %v806, %v1538
        %v1540 = vrot.slane %v1469, %v1539
        %v1541 = vlaneseq
        %v1542 = vshrl.u32 %v1541, 7
        %v1543 = vsub.s32 %v811, %v1542
        %v1544 = vrot.slane %v1472, %v1543
        %v1545 = vsel %vm816, %v1544, %v1540
        %v1546 = vlaneseq
        %v1547 = vshrl.u32 %v1546, 7
        %v1548 = vsub.s32 %v806, %v1547
        %v1549 = vrot.slane %v1475, %v1548
        %v1550 = vlaneseq
        %v1551 = vshrl.u32 %v1550, 7
        %v1552 = vsub.s32 %v811, %v1551
        %v1553 = vrot.slane %v1478, %v1552
        %v1554 = vsel %vm816, %v1553, %v1549
        %v1555 = vlaneseq
        %v1556 = vshrl.u32 %v1555, 7
        %v1557 = vsub.s32 %v806, %v1556
        %v1558 = vrot.slane %v1481, %v1557
        %v1559 = vlaneseq
        %v1560 = vshrl.u32 %v1559, 7
        %v1561 = vsub.s32 %v811, %v1560
        %v1562 = vrot.slane %v1484, %v1561
        %v1563 = vsel %vm816, %v1562, %v1558
        %v1564 = vlaneseq
        %v1565 = vshrl.u32 %v1564, 7
        %v1566 = vsub.s32 %v806, %v1565
        %v1567 = vrot.slane %v1487, %v1566
        %v1568 = vlaneseq
        %v1569 = vshrl.u32 %v1568, 7
        %v1570 = vsub.s32 %v811, %v1569
        %v1571 = vrot.slane %v1490, %v1570
        %v1572 = vsel %vm816, %v1571, %v1567
        %v1573 = vlaneseq
        %v1574 = vshrl.u32 %v1573, 7
        %v1575 = vsub.s32 %v806, %v1574
        %v1576 = vrot.slane %v1493, %v1575
        %v1577 = vlaneseq
        %v1578 = vshrl.u32 %v1577, 7
        %v1579 = vsub.s32 %v811, %v1578
        %v1580 = vrot.slane %v1496, %v1579
        %v1581 = vsel %vm816, %v1580, %v1576
        %v1582 = vlaneseq
        %v1583 = vshrl.u32 %v1582, 7
        %v1584 = vsub.s32 %v806, %v1583
        %v1585 = vrot.slane %v1499, %v1584
        %v1586 = vlaneseq
        %v1587 = vshrl.u32 %v1586, 7
        %v1588 = vsub.s32 %v811, %v1587
        %v1589 = vrot.slane %v1502, %v1588
        %v1590 = vsel %vm816, %v1589, %v1585
        %v1591 = vsel %vm881, %v1536, %v1527
        %v1592 = vsel %vm883, %v1545, %v1591
        %v1593 = vsel %vm885, %v1554, %v1592
        %v1594 = vsel %vm887, %v1563, %v1593
        %v1595 = vsel %vm889, %v1572, %v1594
        %v1596 = vsel %vm891, %v1581, %v1595
        %v1597 = vsel %vm893, %v1590, %v1596
        %v1599 = vsel %vm465, -1e+30, %v1597
        %v1600 = vsel %vm561, %v1599, -inf
        %1601 = vmax.xlane.f32.xlu0 %v1600
        %v1602 = vpop.xlane.xlu0 %1601
        %v1603 = vsub.f32 %v1599, %v1602
        %v1604 = vmul.f32 %v1603, 1.442695
        %v1605 = vpow.pop %v1604
        %v1606 = vsel %vm561, %v1605, 0.0
        %1607 = vadd.xlane.f32.xlu0 %v1606
        %v1608 = vpop.xlane.xlu0 %1607
        %v1609 = vrcp.pop %v1608
        %v1610 = vmul.f32 %v1605, %v1609
        %v1611 = vlaneseq
        %v1612 = vshrl.u32 %v1611, 7
        %v1613 = vsub.s32 0, %v1612
        %v1614 = vrot.slane %v1610, %v1613
        %1616 = vbcast.lane.b32.xlu0 %v1614, 256
        %v1617 = vpop.permute.xlu0 %1616
        %s1619 = sor.u32 256, 8
        %1620 = vbcast.lane.b32.xlu0 %v1614, %s1619
        %v1621 = vpop.permute.xlu0 %1620
        %v1622 = vlaneseq
        %v1623 = vshrl.u32 %v1622, 7
        %v1624 = vsub.s32 1, %v1623
        %v1625 = vrot.slane %v1610, %v1624
        %1627 = vbcast.lane.b32.xlu0 %v1625, 256
        %v1628 = vpop.permute.xlu0 %1627
        %s1630 = sor.u32 256, 8
        %1631 = vbcast.lane.b32.xlu0 %v1625, %s1630
        %v1632 = vpop.permute.xlu0 %1631
        %v1633 = vlaneseq
        %v1634 = vshrl.u32 %v1633, 7
        %v1635 = vsub.s32 2, %v1634
        %v1636 = vrot.slane %v1610, %v1635
        %1638 = vbcast.lane.b32.xlu0 %v1636, 256
        %v1639 = vpop.permute.xlu0 %1638
        %s1641 = sor.u32 256, 8
        %1642 = vbcast.lane.b32.xlu0 %v1636, %s1641
        %v1643 = vpop.permute.xlu0 %1642
        %v1644 = vlaneseq
        %v1645 = vshrl.u32 %v1644, 7
        %v1646 = vsub.s32 3, %v1645
        %v1647 = vrot.slane %v1610, %v1646
        %1649 = vbcast.lane.b32.xlu0 %v1647, 256
        %v1650 = vpop.permute.xlu0 %1649
        %s1652 = sor.u32 256, 8
        %1653 = vbcast.lane.b32.xlu0 %v1647, %s1652
        %v1654 = vpop.permute.xlu0 %1653
        %v1655 = vlaneseq
        %v1656 = vshrl.u32 %v1655, 7
        %v1657 = vsub.s32 4, %v1656
        %v1658 = vrot.slane %v1610, %v1657
        %1660 = vbcast.lane.b32.xlu0 %v1658, 256
        %v1661 = vpop.permute.xlu0 %1660
        %s1663 = sor.u32 256, 8
        %1664 = vbcast.lane.b32.xlu0 %v1658, %s1663
        %v1665 = vpop.permute.xlu0 %1664
        %v1666 = vlaneseq
        %v1667 = vshrl.u32 %v1666, 7
        %v1668 = vsub.s32 5, %v1667
        %v1669 = vrot.slane %v1610, %v1668
        %1671 = vbcast.lane.b32.xlu0 %v1669, 256
        %v1672 = vpop.permute.xlu0 %1671
        %s1674 = sor.u32 256, 8
        %1675 = vbcast.lane.b32.xlu0 %v1669, %s1674
        %v1676 = vpop.permute.xlu0 %1675
        %v1677 = vlaneseq
        %v1678 = vshrl.u32 %v1677, 7
        %v1679 = vsub.s32 6, %v1678
        %v1680 = vrot.slane %v1610, %v1679
        %1682 = vbcast.lane.b32.xlu0 %v1680, 256
        %v1683 = vpop.permute.xlu0 %1682
        %s1685 = sor.u32 256, 8
        %1686 = vbcast.lane.b32.xlu0 %v1680, %s1685
        %v1687 = vpop.permute.xlu0 %1686
        %v1688 = vlaneseq
        %v1689 = vshrl.u32 %v1688, 7
        %v1690 = vsub.s32 7, %v1689
        %v1691 = vrot.slane %v1610, %v1690
        %1693 = vbcast.lane.b32.xlu0 %v1691, 256
        %v1694 = vpop.permute.xlu0 %1693
        %s1696 = sor.u32 256, 8
        %1697 = vbcast.lane.b32.xlu0 %v1691, %s1696
        %v1698 = vpop.permute.xlu0 %1697
        %v1699 = vmul.f32 %v1617, %v448
        %v1700 = vmul.f32 %v1621, %v449
        %v1701 = vmul.f32 %v1628, %v450
        %v1702 = vmul.f32 %v1632, %v451
        %v1703 = vmul.f32 %v1639, %v452
        %v1704 = vmul.f32 %v1643, %v453
        %v1705 = vmul.f32 %v1650, %v454
        %v1706 = vmul.f32 %v1654, %v455
        %v1707 = vmul.f32 %v1661, %v456
        %v1708 = vmul.f32 %v1665, %v457
        %v1709 = vmul.f32 %v1672, %v458
        %v1710 = vmul.f32 %v1676, %v459
        %v1711 = vmul.f32 %v1683, %v460
        %v1712 = vmul.f32 %v1687, %v461
        %v1713 = vmul.f32 %v1694, %v462
        %v1714 = vmul.f32 %v1698, %v463
        %v1715 = vsel %vm480, %v1699, 0.0
        %v1716 = vsel %vm480, %v1700, 0.0
        %v1717 = vadd.f32 %v1715, %v1716
        %v1718 = vrot.slane %v1717, 4
        %v1719 = vadd.f32 %v1717, %v1718
        %v1720 = vrot.slane %v1719, 2
        %v1721 = vadd.f32 %v1719, %v1720
        %v1722 = vrot.slane %v1721, 1
        %v1723 = vadd.f32 %v1721, %v1722
        %v1724 = vsel %vm480, %v1701, 0.0
        %v1725 = vsel %vm480, %v1702, 0.0
        %v1726 = vadd.f32 %v1724, %v1725
        %v1727 = vrot.slane %v1726, 4
        %v1728 = vadd.f32 %v1726, %v1727
        %v1729 = vrot.slane %v1728, 2
        %v1730 = vadd.f32 %v1728, %v1729
        %v1731 = vrot.slane %v1730, 1
        %v1732 = vadd.f32 %v1730, %v1731
        %v1733 = vsel %vm480, %v1703, 0.0
        %v1734 = vsel %vm480, %v1704, 0.0
        %v1735 = vadd.f32 %v1733, %v1734
        %v1736 = vrot.slane %v1735, 4
        %v1737 = vadd.f32 %v1735, %v1736
        %v1738 = vrot.slane %v1737, 2
        %v1739 = vadd.f32 %v1737, %v1738
        %v1740 = vrot.slane %v1739, 1
        %v1741 = vadd.f32 %v1739, %v1740
        %v1742 = vsel %vm480, %v1705, 0.0
        %v1743 = vsel %vm480, %v1706, 0.0
        %v1744 = vadd.f32 %v1742, %v1743
        %v1745 = vrot.slane %v1744, 4
        %v1746 = vadd.f32 %v1744, %v1745
        %v1747 = vrot.slane %v1746, 2
        %v1748 = vadd.f32 %v1746, %v1747
        %v1749 = vrot.slane %v1748, 1
        %v1750 = vadd.f32 %v1748, %v1749
        %v1751 = vsel %vm480, %v1707, 0.0
        %v1752 = vsel %vm480, %v1708, 0.0
        %v1753 = vadd.f32 %v1751, %v1752
        %v1754 = vrot.slane %v1753, 4
        %v1755 = vadd.f32 %v1753, %v1754
        %v1756 = vrot.slane %v1755, 2
        %v1757 = vadd.f32 %v1755, %v1756
        %v1758 = vrot.slane %v1757, 1
        %v1759 = vadd.f32 %v1757, %v1758
        %v1760 = vsel %vm480, %v1709, 0.0
        %v1761 = vsel %vm480, %v1710, 0.0
        %v1762 = vadd.f32 %v1760, %v1761
        %v1763 = vrot.slane %v1762, 4
        %v1764 = vadd.f32 %v1762, %v1763
        %v1765 = vrot.slane %v1764, 2
        %v1766 = vadd.f32 %v1764, %v1765
        %v1767 = vrot.slane %v1766, 1
        %v1768 = vadd.f32 %v1766, %v1767
        %v1769 = vsel %vm480, %v1711, 0.0
        %v1770 = vsel %vm480, %v1712, 0.0
        %v1771 = vadd.f32 %v1769, %v1770
        %v1772 = vrot.slane %v1771, 4
        %v1773 = vadd.f32 %v1771, %v1772
        %v1774 = vrot.slane %v1773, 2
        %v1775 = vadd.f32 %v1773, %v1774
        %v1776 = vrot.slane %v1775, 1
        %v1777 = vadd.f32 %v1775, %v1776
        %v1778 = vsel %vm480, %v1713, 0.0
        %v1779 = vsel %vm480, %v1714, 0.0
        %v1780 = vadd.f32 %v1778, %v1779
        %v1781 = vrot.slane %v1780, 4
        %v1782 = vadd.f32 %v1780, %v1781
        %v1783 = vrot.slane %v1782, 2
        %v1784 = vadd.f32 %v1782, %v1783
        %v1785 = vrot.slane %v1784, 1
        %v1786 = vadd.f32 %v1784, %v1785
        %v1788 = vlaneseq
        %v1789 = vshrl.u32 %v1788, 7
        %v1790 = vsub.s32 0, %v1789
        %v1791 = vrot.slane %v1190, %v1790
        %v1800 = vsel %vm881, %v1732, %v1723
        %v1801 = vsel %vm883, %v1741, %v1800
        %v1802 = vsel %vm885, %v1750, %v1801
        %v1803 = vsel %vm887, %v1759, %v1802
        %v1804 = vsel %vm889, %v1768, %v1803
        %v1805 = vsel %vm891, %v1777, %v1804
        %v1806 = vsel %vm893, %v1786, %v1805
        %1807 = vrot.lane.b32.xlu0 %v1791, 112
        %v1808 = vpop.permute.xlu0 %1807
        %v1810 = vsel %vm480, %v1806, 0
        %v1813 = vsel %vm480, %v1187, 0
        %v1816 = vsel %vm480, %v1188, 0
        %1818 = vmatprep.subr.mxu0 0.0
        %1819 = vmatpush1.xpose.msra.mxu0 %v1813
        %1820 = vmatprep.subr.mxu0 0.0
        %1821 = vmatpush1.xpose.msra.mxu0 %v1816
        %1822 = vmatprep.subr.mxu0 0.0
        %1823 = vmatpush1.xpose.msra.mxu0 0.0
        %1824 = vmatprep.subr.mxu0 0.0
        %1825 = vmatpush1.xpose.msra.mxu0 0.0
        %1826 = vmatprep.subr.mxu0 0.0
        %1827 = vmatpush1.xpose.msra.mxu0 0.0
        %1828 = vmatprep.subr.mxu0 0.0
        %1829 = vmatpush1.xpose.msra.mxu0 0.0
        %1830 = vmatprep.subr.mxu0 0.0
        %1831 = vmatpush1.xpose.msra.mxu0 0.0
        %1832 = vmatprep.subr.mxu0 0.0
        %1833 = vmatpush1.xpose.msra.mxu0 0.0
        %1834 = vmatprep.subr.mxu0 0.0
        %1835 = vmatpush1.xpose.msra.mxu0 0.0
        %1836 = vmatprep.subr.mxu0 0.0
        %1837 = vmatpush1.xpose.msra.mxu0 0.0
        %1838 = vmatprep.subr.mxu0 0.0
        %1839 = vmatpush1.xpose.msra.mxu0 0.0
        %1840 = vmatprep.subr.mxu0 0.0
        %1841 = vmatpush1.xpose.msra.mxu0 0.0
        %1842 = vmatprep.subr.mxu0 0.0
        %1843 = vmatpush1.xpose.msra.mxu0 0.0
        %1844 = vmatprep.subr.mxu0 0.0
        %1845 = vmatpush1.xpose.msra.mxu0 0.0
        %1846 = vmatprep.subr.mxu0 0.0
        %1847 = vmatpush1.xpose.msra.mxu0 0.0
        %1848 = vmatprep.subr.mxu0 0.0
        %1849 = vmatpush1.xpose.msra.mxu0 0.0
        %1850 = vmatprep.subr.mxu0 0.0
        %1851 = vmatpush1.xpose.msra.mxu0 0.0
        %1852 = vmatprep.subr.mxu0 0.0
        %1853 = vmatpush1.xpose.msra.mxu0 0.0
        %1854 = vmatprep.subr.mxu0 0.0
        %1855 = vmatpush1.xpose.msra.mxu0 0.0
        %1856 = vmatprep.subr.mxu0 0.0
        %1857 = vmatpush1.xpose.msra.mxu0 0.0
        %1858 = vmatprep.subr.mxu0 0.0
        %1859 = vmatpush1.xpose.msra.mxu0 0.0
        %1860 = vmatprep.subr.mxu0 0.0
        %1861 = vmatpush1.xpose.msra.mxu0 0.0
        %1862 = vmatprep.subr.mxu0 0.0
        %1863 = vmatpush1.xpose.msra.mxu0 0.0
        %1864 = vmatprep.subr.mxu0 0.0
        %1865 = vmatpush1.xpose.msra.mxu0 0.0
        %1866 = vmatprep.subr.mxu0 0.0
        %1867 = vmatpush1.xpose.msra.mxu0 0.0
        %1868 = vmatprep.subr.mxu0 0.0
        %1869 = vmatpush1.xpose.msra.mxu0 0.0
        %1870 = vmatprep.subr.mxu0 0.0
        %1871 = vmatpush1.xpose.msra.mxu0 0.0
        %1872 = vmatprep.subr.mxu0 0.0
        %1873 = vmatpush1.xpose.msra.mxu0 0.0
        %1874 = vmatprep.subr.mxu0 0.0
        %1875 = vmatpush1.xpose.msra.mxu0 0.0
        %1876 = vmatprep.subr.mxu0 0.0
        %1877 = vmatpush1.xpose.msra.mxu0 0.0
        %1878 = vmatprep.subr.mxu0 0.0
        %1879 = vmatpush1.xpose.msra.mxu0 0.0
        %1880 = vmatprep.subr.mxu0 0.0
        %1881 = vmatpush1.xpose.msra.mxu0 0.0
        %1882 = vmatprep.mubr.f32.mxu0 0.0
        %1883 = vmatmul.mubr.f32.gmra.mrb[0].mxu0 %v1810
        %v1884 = vpop.f32.mrb[0].mxu0
        %v1885 = vadd.f32 %v1808, %v1884
        %v1886 = vpop.f32.mrb[0].mxu0
        %1887 = vdwg.mxu0
        %v1888 = vadd.f32 %v907, %v1610
        %1890 = vrot.lane.b32.xlu0 %v1885, 16
        %v1891 = vpop.permute.xlu0 %1890
        %v1893 = vsel %vm561, %v1180, %v1891
        %1894 = vst.msk [vmem:[%s431] sm:$0xff] %vm480, %v1893
        %v1895 = vmul.f32 %v1888, 0.5
        %1896 = vst.msk [vmem:[%s446] sm:$0xff] %vm561, %v1895
        %s1897 = sand.u32 %s222, 1
        %s1898 = scalar_lea.sflag [#allocation4], %s1897
        %s1899 = sand.u32 %s222, 1
        %s1900 = smul.addr %s1899, 8
        %s1901 = scalar_lea.vmem [#allocation10], %s1900
        %p1902 = scmp.lt.s32.totalorder %s31, 2
        %s1903 = scalar_select %p1902, %s31, 2
        %s1904 = smul.addr %s1903, 8
        %s1905 = scalar_lea.vmem %s9, %s1904
        // Predicated region
        $region69: #{tpu_custom_call.1} parent=51 // pred_check
          %p1906 = pneg %p232
        $region70: #{tpu_custom_call.1} parent=51 // pred_check_branch
          %1908 = sbr.rel (%p1906) target = $region72
        $region71: #{tpu_custom_call.1} parent=51 // pred_region
          %s1910 = ssub.s32 128, 128
          %1911 = vsyncadd %s1898, %s1910
          %s1912 = smul.addr %s31, 128
          %s1913 = scalar_lea.hbm %s8, %s1912
          %s1915 = sshll.u32 %s1901, 4
          %s1916 = int_to_ptr.vmem [resolvable:$true] %s1915
          %1918 = dma.vmem_to_hbm [thread:$0]  %s1916, 128, %s1913, %s1898
        $region72: #{tpu_custom_call.1} parent=51 // pred_fallthru
          _
        // Predicated region
        $region73: #{tpu_custom_call.1} parent=51 // pred_check
          %p1919 = pneg %p258
        $region74: #{tpu_custom_call.1} parent=51 // pred_check_branch
          %1921 = sbr.rel (%p1919) target = $region76
        $region75: #{tpu_custom_call.1} parent=51 // pred_region
          _
        $region76: #{tpu_custom_call.1} parent=51 // pred_fallthru
          _
      $region52: #{tpu_custom_call.1} parent=5 // pred_fallthru
        _
      %p1922 = scmp.le.s32.totalorder 2, %s26
      // Predicated region
      $region77: #{tpu_custom_call.1} parent=5 // pred_check
        %p1923 = pneg %p1922
      $region78: #{tpu_custom_call.1} parent=5 // pred_check_branch
        %1925 = sbr.rel (%p1923) target = $region80
      $region79: #{tpu_custom_call.1} parent=5 // pred_region
        %s1926 = ssub.s32 %s26, 2
        // Predicated region
        $region81: #{tpu_custom_call.1} parent=79 // pred_check
          %p1927 = pneg %p238
        $region82: #{tpu_custom_call.1} parent=79 // pred_check_branch
          %1929 = sbr.rel (%p1927) target = $region84
        $region83: #{tpu_custom_call.1} parent=79 // pred_region
          %s1930 = sand.u32 %s223, 1
          %s1931 = scalar_lea.sflag [#allocation4], %s1930
          %s1932 = sand.u32 %s223, 1
          %s1933 = smul.addr %s1932, 8
          %s1934 = scalar_lea.vmem [#allocation10], %s1933
          %1935 = dma.done %s1931, 128
        $region84: #{tpu_custom_call.1} parent=79 // pred_fallthru
          _
        // Predicated region
        $region85: #{tpu_custom_call.1} parent=79 // pred_check
          %p1936 = pneg %p264
        $region86: #{tpu_custom_call.1} parent=79 // pred_check_branch
          %1938 = sbr.rel (%p1936) target = $region88
        $region87: #{tpu_custom_call.1} parent=79 // pred_region
          %p1939 = scmp.lt.s32.totalorder %s32, 2
          %s1940 = scalar_select %p1939, %s32, 2
          %s1941 = smul.addr %s1940, 8
          %s1942 = scalar_lea.vmem %s9, %s1941
        $region88: #{tpu_custom_call.1} parent=79 // pred_fallthru
          _
      $region80: #{tpu_custom_call.1} parent=5 // pred_fallthru
        _
    $region6: #{tpu_custom_call.1} parent=1 // loop_footer
      %s30 = sadd.s32 1, %s26
    $region7: #{tpu_custom_call.1} parent=1 // loop_footer_branch
      %25 = sbr.rel target = $region3
    $region8: #{tpu_custom_call.1} parent=1 // loop_exit
      _
    %1943 = vsyncpa [#allocation3], 1
    %s1944 = scalar_lea.sflag [#allocation3], 1
    %1945 = vsyncpa %s1944, 1
    %1946 = vsyncpa [#allocation6], 1
    %s1947 = scalar_lea.sflag [#allocation6], 1
    %1948 = vsyncpa %s1947, 1
    %1949 = vsyncpa [#allocation9], 1
    %1950 = vsyncpa [#allocation4], 1
    %s1951 = scalar_lea.sflag [#allocation4], 1
    %1952 = vsyncpa %s1951, 1

</llo_original>
